<compile_context>
chip_gen: v7x
topology: tpu7x:2x2x1
jax: 0.10.0
libtpu: 0.0.40
codegen_flags: <defaults>
</compile_context>

<pallas_src>
import jax
import jax.numpy as jnp
from jax.experimental import pallas as pl
from jax.experimental.pallas import tpu as pltpu

# Model dims (from BERT_Arch.__init__): fc1: 768 -> 512, fc2: 512 -> 2.
H_BERT = 768      # bert pooler_output width (fc1 in_features)
H_FC1 = 512       # fc1 out_features
N_CLS = 2         # fc2 out_features (number of classes)

# Kernel tiling.
TM = 128          # batch tile (128-aligned: matches v5e MXU, fine on v6e/v7x)
TK = 256          # fc1 K tile so W1 DMA overlaps MXU work via the BlockSpec pipeline
N_PAD = 128       # lane-dense padded class dim (real logits live in [:, :N_CLS])
_NEG = -1e30      # bias for padded logit columns: exp(-1e30 - m) == 0 in f32


def bert_head_kernel(x_ref, w1_ref, b1_ref, w2_ref, b2_ref, o_ref, acc_ref):
    """fc1 -> ReLU -> dropout(eval: identity) -> fc2 -> log_softmax(dim=1).

    grid = (batch_tiles, k_tiles); fc1 accumulates over the second (arbitrary)
    axis, fc2 + log_softmax run once at the last k step.
    """
    k = pl.program_id(1)

    @pl.when(k == 0)
    def _init():
        acc_ref[...] = jnp.zeros_like(acc_ref)

    # fc1 partial product: bf16 x bf16 on the MXU, f32 accumulate.
    x = x_ref[...].astype(jnp.bfloat16)                         # [TM, TK]
    acc_ref[...] += jnp.dot(x, w1_ref[...],
                            preferred_element_type=jnp.float32)

    @pl.when(k == pl.num_programs(1) - 1)
    def _finalize():
        h = jnp.maximum(acc_ref[...] + b1_ref[...], 0.0)        # [TM, 512] f32
        # TODO(synk): training-mode dropout (p=0.1, scaled by 1/0.9) omitted —
        # nn.Dropout is the identity in eval; would use pltpu.prng_random_bits.
        logits = jnp.dot(h.astype(jnp.bfloat16), w2_ref[...],
                         preferred_element_type=jnp.float32)    # [TM, 128]
        logits = logits + b2_ref[...]                           # pad cols -> -1e30
        # LogSoftmax over dim=1 (numerically stable); padded cols add exp()==0.
        m = jnp.max(logits, axis=1, keepdims=True)
        z = logits - m
        lse = jnp.log(jnp.sum(jnp.exp(z), axis=1, keepdims=True))
        o_ref[...] = (z - lse).astype(o_ref.dtype)


def bert_arch_head(cls_hs, w1_bf16, b1, w2_pad_bf16, b2_pad):
    """Pallas wrapper. cls_hs: [B, 768] f32 -> log-probs [B, 2] f32."""
    b_in = cls_hs.shape[0]
    b_pad = pl.cdiv(b_in, TM) * TM
    x = cls_hs if b_pad == b_in else jnp.pad(cls_hs, ((0, b_pad - b_in), (0, 0)))
    nb, nk = b_pad // TM, H_BERT // TK

    b1_2d = b1.reshape(1, H_FC1).astype(jnp.float32)
    b2_2d = b2_pad.reshape(1, N_PAD).astype(jnp.float32)

    flops = 2 * b_pad * H_BERT * H_FC1 + 2 * b_pad * H_FC1 * N_PAD
    bytes_accessed = (x.size * 4 + w1_bf16.size * 2 + w2_pad_bf16.size * 2
                      + (H_FC1 + N_PAD) * 4 + b_pad * N_PAD * 4)

    out = pl.pallas_call(
        bert_head_kernel,
        out_shape=jax.ShapeDtypeStruct((b_pad, N_PAD), jnp.float32),
        grid_spec=pltpu.PrefetchScalarGridSpec(
            num_scalar_prefetch=0,
            grid=(nb, nk),
            in_specs=[
                pl.BlockSpec((TM, TK), lambda i, k: (i, k)),        # x tile (f32)
                pl.BlockSpec((TK, H_FC1), lambda i, k: (k, 0)),     # W1 tile (bf16)
                pl.BlockSpec((1, H_FC1), lambda i, k: (0, 0)),      # b1 (resident)
                pl.BlockSpec((H_FC1, N_PAD), lambda i, k: (0, 0)),  # W2 pad (resident)
                pl.BlockSpec((1, N_PAD), lambda i, k: (0, 0)),      # b2 pad (resident)
            ],
            out_specs=pl.BlockSpec((TM, N_PAD), lambda i, k: (i, 0)),
            scratch_shapes=[pltpu.VMEM((TM, H_FC1), jnp.float32)],
        ),
        compiler_params=pltpu.CompilerParams(
            dimension_semantics=("parallel", "arbitrary")),
        cost_estimate=pl.CostEstimate(
            flops=flops,
            transcendentals=b_pad * (N_PAD + 1),
            bytes_accessed=bytes_accessed),
    )(x, w1_bf16, b1_2d, w2_pad_bf16, b2_2d)
    return out[:b_in, :N_CLS]


def prepare_head_params(w1, b1, w2, b2):
    """Pack torch-Linear-style params into the kernel layout.

    w1: [768, 512], w2: [512, 2] (so x @ w == torch x @ W.T). Weights are shipped
    bf16; W2/b2 are lane-padded to 128 columns, padded bias entries set to -1e30.
    """
    w1_bf16 = w1.astype(jnp.bfloat16)
    w2_pad = jnp.zeros((H_FC1, N_PAD), jnp.float32).at[:, :N_CLS].set(w2)
    w2_pad_bf16 = w2_pad.astype(jnp.bfloat16)
    b2_pad = jnp.full((N_PAD,), _NEG, jnp.float32).at[:N_CLS].set(b2)
    return w1_bf16, b1.astype(jnp.float32), w2_pad_bf16, b2_pad


def _init_linear(key, fan_in, fan_out):
    """Deterministic torch.nn.Linear-style init: U(-1/sqrt(fan_in), 1/sqrt(fan_in))."""
    kw, kb = jax.random.split(key)
    bound = 1.0 / (fan_in ** 0.5)
    w = jax.random.uniform(kw, (fan_in, fan_out), jnp.float32, -bound, bound)
    b = jax.random.uniform(kb, (fan_out,), jnp.float32, -bound, bound)
    return w, b


def _reference_head(cls_hs, w1_bf16, b1, w2_pad_bf16, b2):
    """Pure-JAX reference with the same dtype choreography (bf16 MXU, f32 acc)."""
    x = cls_hs.astype(jnp.bfloat16)
    h = jnp.dot(x, w1_bf16, preferred_element_type=jnp.float32) + b1
    h = jnp.maximum(h, 0.0)
    w2 = w2_pad_bf16[:, :N_CLS]
    logits = jnp.dot(h.astype(jnp.bfloat16), w2,
                     preferred_element_type=jnp.float32) + b2
    return jax.nn.log_softmax(logits, axis=1)


if __name__ == "__main__":
    B, SEQ = 2, 8
    key = jax.random.PRNGKey(0)
    k_ids, k_cls, k_fc1, k_fc2 = jax.random.split(key, 4)

    # Module-interface inputs (consumed only by the external BERT backbone).
    sent_id = jax.random.randint(k_ids, (B, SEQ), 0, 30522, dtype=jnp.int32)
    mask = jnp.ones((B, SEQ), dtype=jnp.int32)

    # TODO(synk): the HuggingFace `bert` submodule is external — its
    # pooler_output [B, 768] is synthesized deterministically here.
    cls_hs = jax.random.normal(k_cls, (B, H_BERT), jnp.float32)

    # Deterministic head parameters (shapes from __init__: 768->512, 512->2).
    w1, b1 = _init_linear(k_fc1, H_BERT, H_FC1)
    w2, b2 = _init_linear(k_fc2, H_FC1, N_CLS)
    w1_bf16, b1_f32, w2_pad_bf16, b2_pad = prepare_head_params(w1, b1, w2, b2)

    out = bert_arch_head(cls_hs, w1_bf16, b1_f32, w2_pad_bf16, b2_pad)
    out = jax.block_until_ready(out)

    ref = _reference_head(cls_hs, w1_bf16, b1_f32, w2_pad_bf16, b2)
    assert out.shape == (B, N_CLS)
    assert jnp.allclose(out, ref, atol=5e-4, rtol=5e-4), "mismatch vs JAX reference"

    print("KERNEL_OK")
</pallas_src>

<mosaic_0001>
module attributes {stable_mosaic.version = 11 : i64} {
  func.func @bert_head_kernel(%arg0: i32, %arg1: i32, %arg2: memref<128x256xf32, #tpu.memory_space<vmem>>, %arg3: memref<256x512xbf16, #tpu.memory_space<vmem>>, %arg4: memref<1x512xf32, #tpu.memory_space<vmem>>, %arg5: memref<512x128xbf16, #tpu.memory_space<vmem>>, %arg6: memref<1x128xf32, #tpu.memory_space<vmem>>, %arg7: memref<128x128xf32, #tpu.memory_space<vmem>>, %arg8: memref<128x512xf32, #tpu.memory_space<vmem>>) attributes {dimension_semantics = [#tpu.dimension_semantics<parallel>, #tpu.dimension_semantics<arbitrary>], iteration_bounds = array<i64: 1, 3>, scalar_prefetch = 0 : i64, scratch_operands = 1 : i64, tpu.core_type = #tpu.core_type<tc>, window_params = [{transform_indices = @transform_0, window_bounds = array<i64: 128, 256>}, {transform_indices = @transform_1, window_bounds = array<i64: 256, 512>}, {pipeline_mode = #tpu.pipeline_mode<synchronous>, transform_indices = @transform_2, window_bounds = array<i64: 1, 512>}, {pipeline_mode = #tpu.pipeline_mode<synchronous>, transform_indices = @transform_3, window_bounds = array<i64: 512, 128>}, {pipeline_mode = #tpu.pipeline_mode<synchronous>, transform_indices = @transform_4, window_bounds = array<i64: 1, 128>}, {transform_indices = @transform_5, window_bounds = array<i64: 128, 128>}]} {
    %c0_i32 = arith.constant 0 : i32
    %0 = arith.cmpi eq, %arg1, %c0_i32 : i32
    %1 = arith.extui %0 : i1 to i32
    %c0_i32_0 = arith.constant 0 : i32
    %2 = arith.cmpi ne, %1, %c0_i32_0 : i32
    scf.if %2 {
      %cst_9 = arith.constant 0.000000e+00 : f32
      %13 = vector.broadcast %cst_9 : f32 to vector<128x512xf32>
      %c0_10 = arith.constant 0 : index
      %c0_11 = arith.constant 0 : index
      %14 = vector.load %arg8[%c0_10, %c0_11] : memref<128x512xf32, #tpu.memory_space<vmem>>, vector<128x512xf32>
      tpu.vector_store %arg8[%c0_10, %c0_11], %13 {strides = array<i32>} : memref<128x512xf32, #tpu.memory_space<vmem>>, vector<128x512xf32>,
    } else {
    }
    %c0 = arith.constant 0 : index
    %c0_1 = arith.constant 0 : index
    %3 = vector.load %arg2[%c0, %c0_1] : memref<128x256xf32, #tpu.memory_space<vmem>>, vector<128x256xf32>
    %4 = arith.truncf %3 : vector<128x256xf32> to vector<128x256xbf16>
    %c0_2 = arith.constant 0 : index
    %c0_3 = arith.constant 0 : index
    %5 = vector.load %arg8[%c0_2, %c0_3] : memref<128x512xf32, #tpu.memory_space<vmem>>, vector<128x512xf32>
    %c0_4 = arith.constant 0 : index
    %c0_5 = arith.constant 0 : index
    %6 = vector.load %arg3[%c0_4, %c0_5] : memref<256x512xbf16, #tpu.memory_space<vmem>>, vector<256x512xbf16>
    %cst = arith.constant dense<0.000000e+00> : vector<128x512xf32>
    %7 = tpu.matmul %4, %6, %cst {dimension_numbers = #tpu.dot_dimension_numbers<[1], [0], [0], [1], [0, 0, 1, 1], [], []>} : vector<128x256xbf16>, vector<256x512xbf16>, vector<128x512xf32> -> vector<128x512xf32>
    %8 = arith.addf %5, %7 : vector<128x512xf32>
    %c0_6 = arith.constant 0 : index
    %c0_7 = arith.constant 0 : index
    %9 = vector.load %arg8[%c0_6, %c0_7] : memref<128x512xf32, #tpu.memory_space<vmem>>, vector<128x512xf32>
    tpu.vector_store %arg8[%c0_6, %c0_7], %8 {strides = array<i32>} : memref<128x512xf32, #tpu.memory_space<vmem>>, vector<128x512xf32>,
    %c2_i32 = arith.constant 2 : i32
    %10 = arith.cmpi eq, %arg1, %c2_i32 : i32
    %11 = arith.extui %10 : i1 to i32
    %c0_i32_8 = arith.constant 0 : i32
    %12 = arith.cmpi ne, %11, %c0_i32_8 : i32
    scf.if %12 {
      %c0_9 = arith.constant 0 : index
      %c0_10 = arith.constant 0 : index
      %13 = vector.load %arg8[%c0_9, %c0_10] : memref<128x512xf32, #tpu.memory_space<vmem>>, vector<128x512xf32>
      %c0_11 = arith.constant 0 : index
      %c0_12 = arith.constant 0 : index
      %14 = vector.load %arg4[%c0_11, %c0_12] : memref<1x512xf32, #tpu.memory_space<vmem>>, vector<1x512xf32>
      %15 = vector.broadcast %14 : vector<1x512xf32> to vector<128x512xf32>
      %16 = arith.addf %13, %15 : vector<128x512xf32>
      %cst_13 = arith.constant 0.000000e+00 : f32
      %17 = vector.broadcast %cst_13 : f32 to vector<128x512xf32>
      %18 = arith.maximumf %16, %17 : vector<128x512xf32>
      %19 = arith.truncf %18 : vector<128x512xf32> to vector<128x512xbf16>
      %c0_14 = arith.constant 0 : index
      %c0_15 = arith.constant 0 : index
      %20 = vector.load %arg5[%c0_14, %c0_15] : memref<512x128xbf16, #tpu.memory_space<vmem>>, vector<512x128xbf16>
      %cst_16 = arith.constant dense<0.000000e+00> : vector<128x128xf32>
      %21 = tpu.matmul %19, %20, %cst_16 {dimension_numbers = #tpu.dot_dimension_numbers<[1], [0], [0], [1], [0, 0, 1, 1], [], []>} : vector<128x512xbf16>, vector<512x128xbf16>, vector<128x128xf32> -> vector<128x128xf32>
      %c0_17 = arith.constant 0 : index
      %c0_18 = arith.constant 0 : index
      %22 = vector.load %arg6[%c0_17, %c0_18] : memref<1x128xf32, #tpu.memory_space<vmem>>, vector<1x128xf32>
      %23 = vector.broadcast %22 : vector<1x128xf32> to vector<128x128xf32>
      %24 = arith.addf %21, %23 : vector<128x128xf32>
      %cst_19 = arith.constant dense<0xFF800000> : vector<128xf32>
      %25 = vector.multi_reduction <maximumf>, %24, %cst_19 [1] : vector<128x128xf32> to vector<128xf32>
      %26 = vector.shape_cast %25 : vector<128xf32> to vector<128x1xf32>
      %27 = vector.broadcast %26 : vector<128x1xf32> to vector<128x128xf32>
      %28 = arith.subf %24, %27 : vector<128x128xf32>
      %29 = math.exp %28 : vector<128x128xf32>
      %cst_20 = arith.constant dense<0.000000e+00> : vector<128xf32>
      %30 = vector.multi_reduction <add>, %29, %cst_20 [1] : vector<128x128xf32> to vector<128xf32>
      %31 = vector.shape_cast %30 : vector<128xf32> to vector<128x1xf32>
      %32 = math.log %31 : vector<128x1xf32>
      %33 = vector.broadcast %32 : vector<128x1xf32> to vector<128x128xf32>
      %34 = arith.subf %28, %33 : vector<128x128xf32>
      %c0_21 = arith.constant 0 : index
      %c0_22 = arith.constant 0 : index
      %35 = vector.load %arg7[%c0_21, %c0_22] : memref<128x128xf32, #tpu.memory_space<vmem>>, vector<128x128xf32>
      tpu.vector_store %arg7[%c0_21, %c0_22], %34 {strides = array<i32>} : memref<128x128xf32, #tpu.memory_space<vmem>>, vector<128x128xf32>,
    } else {
    }
    return
  }
  func.func @transform_0(%arg0: i32, %arg1: i32) -> (i32, i32) {
    %c0_i32 = arith.constant 0 : i32
    return %arg0, %arg1 : i32, i32
  }
  func.func @transform_1(%arg0: i32, %arg1: i32) -> (i32, i32) {
    %c0_i32 = arith.constant 0 : i32
    %c0_i32_0 = arith.constant 0 : i32
    return %arg1, %c0_i32 : i32, i32
  }
  func.func @transform_2(%arg0: i32, %arg1: i32) -> (i32, i32) {
    %c0_i32 = arith.constant 0 : i32
    %c0_i32_0 = arith.constant 0 : i32
    %c0_i32_1 = arith.constant 0 : i32
    return %c0_i32, %c0_i32_0 : i32, i32
  }
  func.func @transform_3(%arg0: i32, %arg1: i32) -> (i32, i32) {
    %c0_i32 = arith.constant 0 : i32
    %c0_i32_0 = arith.constant 0 : i32
    %c0_i32_1 = arith.constant 0 : i32
    return %c0_i32, %c0_i32_0 : i32, i32
  }
  func.func @transform_4(%arg0: i32, %arg1: i32) -> (i32, i32) {
    %c0_i32 = arith.constant 0 : i32
    %c0_i32_0 = arith.constant 0 : i32
    %c0_i32_1 = arith.constant 0 : i32
    return %c0_i32, %c0_i32_0 : i32, i32
  }
  func.func @transform_5(%arg0: i32, %arg1: i32) -> (i32, i32) {
    %c0_i32 = arith.constant 0 : i32
    %c0_i32_0 = arith.constant 0 : i32
    return %arg0, %c0_i32 : i32, i32
  }
}

</mosaic_0001>

<llo_original>
// kernel: tpu_custom_call.1
$region0: #{tpu_custom_call.1}
  #allocation0 [shape = 'u32[]', space=smem, size = 0x4, offset = 0x4, fixed_abs, tag = 'smem constant byte address 0x4 - core index']
  #allocation1 [shape = 'u32[144,128]{1,0:T(1,128)}', space=vmem, size = 0x12000, scoped, tag = 'internal scratch']
  #allocation2 [shape = 'f32[128,512]{1,0:T(8,128)}', space=vmem, size = 0x40000, scoped, tag = 'scratch operand']
  %s0 = inlined_call_operand.hbm [shape: f32[128,768], index: 0, kind: input, shape index: {}]
  %s1 = inlined_call_operand.hbm [shape: bf16[768,512], index: 1, kind: input, shape index: {}]
  %s2 = inlined_call_operand.vmem [shape: f32[1,512], index: 2, kind: input, shape index: {}]
  %s3 = inlined_call_operand.hbm [shape: bf16[512,128], index: 3, kind: input, shape index: {}]
  %s4 = inlined_call_operand.vmem [shape: f32[1,128], index: 4, kind: input, shape index: {}]
  %s5 = inlined_call_operand.hbm [shape: f32[128,128], index: 5, kind: output, shape index: {}]
  %s6 = sld [smem:[#allocation0]]
  $region73: #{tpu_custom_call.1} parent=0
    _
  %s8 = ssub.s32 1, %s6
  %s9 = scalar_select 0, %s8, %s6
  $region1: #{tpu_custom_call.1} parent=0
    #allocation3 [shape = 'u8[262144]{0}', space=vmem, size = 0x40000, scoped, tag = 'input window, operand 0']
    #allocation4 [shape = 's32[2]{0}', space=sflag, size = 0x8, scoped, tag = 'scoped memory for tpu_custom_call.1']
    #allocation5 [shape = 's32[2]{0}', space=sflag, size = 0x8, scoped, tag = 'scoped memory for tpu_custom_call.1']
    #allocation6 [shape = 'u8[524288]{0}', space=vmem, size = 0x80000, scoped, tag = 'input window, operand 1']
    #allocation7 [shape = 's32[2]{0}', space=sflag, size = 0x8, scoped, tag = 'scoped memory for tpu_custom_call.1']
    #allocation8 [shape = 'u8[131072]{0}', space=vmem, size = 0x20000, scoped, tag = 'input window, operand 3, single buffered']
    #allocation9 [shape = 'u8[65536]{0}', space=vmem, size = 0x10000, scoped, tag = 'output window, operand 0, single buffered']
    %10 = vsyncpa [#allocation4], 0
    %s11 = scalar_lea.sflag [#allocation4], 1
    %12 = vsyncpa %s11, 0
    %13 = vsyncpa [#allocation7], 0
    %s14 = scalar_lea.sflag [#allocation7], 1
    %15 = vsyncpa %s14, 0
    %16 = vsyncpa [#allocation5], 0
    loop: start=0, step=1, limit=5
    $region2: #{tpu_custom_call.1} parent=1 // loop_pre_header
      _
    $region3: #{tpu_custom_call.1} parent=1 // loop_header
      %s18 = sphi 0, %s22
      %p19 = scmp.ge.s32.totalorder %s18, 5
      %s25 = sphi 0, %s37
      %s26 = sphi 0, %s33
      %s27 = sphi 0, %s25
      %s28 = sphi 0, %s26
      %s29 = sphi 0, %s27
      %s30 = sphi 0, %s28
      %s42 = sphi 0, %s44
      %s45 = sphi 0, %s42
      %s46 = sphi 0, %s45
      %s62 = sphi 0, %s46
      %s68 = sphi 0, %s70
      %s71 = sphi 0, %s68
      %s72 = sphi 0, %s71
      %s88 = sphi 0, %s72
      %s92 = sphi 0, %s92
      %s94 = sphi 0, %s92
      %s95 = sphi 0, %s94
      %s109 = sphi 0, %s95
      %s113 = sphi 0, %s113
      %s115 = sphi 0, %s113
      %s116 = sphi 0, %s115
      %s130 = sphi 0, %s116
      %s134 = sphi 0, %s134
      %s136 = sphi 0, %s134
      %s137 = sphi 0, %s136
      %s151 = sphi 0, %s137
      %s157 = sphi 0, %s159
      %s160 = sphi 0, %s157
      %s161 = sphi 0, %s160
      %s177 = sphi 0, %s161
    $region4: #{tpu_custom_call.1} parent=1 // loop_header_branch
      %21 = sbr.rel (%p19) target = $region8
    $region5: #{tpu_custom_call.1} parent=1 // loop_body
      %s23 = ssub.s32 %s18, 1
      %s24 = ssub.s32 %s18, 2
      %s31 = sadd.s32 1, %s26
      %p32 = scmp.ge.s32.totalorder %s31, 3
      %s33 = scalar_select %p32, 0, %s31
      %s34 = sadd.s32 1, %s25
      %s35 = scalar_select %p32, %s34, %s25
      %p36 = scmp.ge.s32.totalorder %s35, 1
      %s37 = scalar_select %p36, 0, %s35
      %s38 = ssub.s32 %s25, %s37
      %s39 = ssub.s32 %s26, %s33
      %s40 = sor.u32 %s38, %s39
      %p41 = scmp.eq.s32.totalorder %s40, 0
      %s43 = sadd.s32 %s42, 1
      %s44 = scalar_select %p41, %s42, %s43
      %p47 = pneg %p41
      %p48 = scmp.eq.s32.totalorder %s18, 2
      %p49 = por %p47, %p48
      %p50 = scmp.ne.s32.totalorder %s42, %s45
      %p51 = scmp.eq.s32.totalorder %s18, 0
      %p52 = por %p50, %p51
      %p53 = scmp.ne.s32.totalorder %s42, %s45
      %p54 = scmp.eq.s32.totalorder %s23, 2
      %p55 = por %p53, %p54
      %p56 = scmp.ne.s32.totalorder %s45, %s46
      %p57 = scmp.eq.s32.totalorder %s23, 0
      %p58 = por %p56, %p57
      %p59 = scmp.ne.s32.totalorder %s45, %s46
      %p60 = scmp.eq.s32.totalorder %s24, 2
      %p61 = por %p59, %p60
      %p63 = scmp.ne.s32.totalorder %s46, %s62
      %p64 = scmp.eq.s32.totalorder %s24, 0
      %p65 = por %p63, %p64
      %s66 = ssub.s32 %s26, %s33
      %p67 = scmp.eq.s32.totalorder %s66, 0
      %s69 = sadd.s32 %s68, 1
      %s70 = scalar_select %p67, %s68, %s69
      %p73 = pneg %p67
      %p74 = scmp.eq.s32.totalorder %s18, 2
      %p75 = por %p73, %p74
      %p76 = scmp.ne.s32.totalorder %s68, %s71
      %p77 = scmp.eq.s32.totalorder %s18, 0
      %p78 = por %p76, %p77
      %p79 = scmp.ne.s32.totalorder %s68, %s71
      %p80 = scmp.eq.s32.totalorder %s23, 2
      %p81 = por %p79, %p80
      %p82 = scmp.ne.s32.totalorder %s71, %s72
      %p83 = scmp.eq.s32.totalorder %s23, 0
      %p84 = por %p82, %p83
      %p85 = scmp.ne.s32.totalorder %s71, %s72
      %p86 = scmp.eq.s32.totalorder %s24, 2
      %p87 = por %p85, %p86
      %p89 = scmp.ne.s32.totalorder %s72, %s88
      %p90 = scmp.eq.s32.totalorder %s24, 0
      %p91 = por %p89, %p90
      %s93 = sadd.s32 %s92, 1
      %p96 = scmp.eq.s32.totalorder %s18, 2
      %p97 = scmp.ne.s32.totalorder %s92, %s94
      %p98 = scmp.eq.s32.totalorder %s18, 0
      %p99 = por %p97, %p98
      %p100 = scmp.ne.s32.totalorder %s92, %s94
      %p101 = scmp.eq.s32.totalorder %s23, 2
      %p102 = por %p100, %p101
      %p103 = scmp.ne.s32.totalorder %s94, %s95
      %p104 = scmp.eq.s32.totalorder %s23, 0
      %p105 = por %p103, %p104
      %p106 = scmp.ne.s32.totalorder %s94, %s95
      %p107 = scmp.eq.s32.totalorder %s24, 2
      %p108 = por %p106, %p107
      %p110 = scmp.ne.s32.totalorder %s95, %s109
      %p111 = scmp.eq.s32.totalorder %s24, 0
      %p112 = por %p110, %p111
      %s114 = sadd.s32 %s113, 1
      %p117 = scmp.eq.s32.totalorder %s18, 2
      %p118 = scmp.ne.s32.totalorder %s113, %s115
      %p119 = scmp.eq.s32.totalorder %s18, 0
      %p120 = por %p118, %p119
      %p121 = scmp.ne.s32.totalorder %s113, %s115
      %p122 = scmp.eq.s32.totalorder %s23, 2
      %p123 = por %p121, %p122
      %p124 = scmp.ne.s32.totalorder %s115, %s116
      %p125 = scmp.eq.s32.totalorder %s23, 0
      %p126 = por %p124, %p125
      %p127 = scmp.ne.s32.totalorder %s115, %s116
      %p128 = scmp.eq.s32.totalorder %s24, 2
      %p129 = por %p127, %p128
      %p131 = scmp.ne.s32.totalorder %s116, %s130
      %p132 = scmp.eq.s32.totalorder %s24, 0
      %p133 = por %p131, %p132
      %s135 = sadd.s32 %s134, 1
      %p138 = scmp.eq.s32.totalorder %s18, 2
      %p139 = scmp.ne.s32.totalorder %s134, %s136
      %p140 = scmp.eq.s32.totalorder %s18, 0
      %p141 = por %p139, %p140
      %p142 = scmp.ne.s32.totalorder %s134, %s136
      %p143 = scmp.eq.s32.totalorder %s23, 2
      %p144 = por %p142, %p143
      %p145 = scmp.ne.s32.totalorder %s136, %s137
      %p146 = scmp.eq.s32.totalorder %s23, 0
      %p147 = por %p145, %p146
      %p148 = scmp.ne.s32.totalorder %s136, %s137
      %p149 = scmp.eq.s32.totalorder %s24, 2
      %p150 = por %p148, %p149
      %p152 = scmp.ne.s32.totalorder %s137, %s151
      %p153 = scmp.eq.s32.totalorder %s24, 0
      %p154 = por %p152, %p153
      %s155 = ssub.s32 %s25, %s37
      %p156 = scmp.eq.s32.totalorder %s155, 0
      %s158 = sadd.s32 %s157, 1
      %s159 = scalar_select %p156, %s157, %s158
      %p162 = pneg %p156
      %p163 = scmp.eq.s32.totalorder %s18, 2
      %p164 = por %p162, %p163
      %p165 = scmp.ne.s32.totalorder %s157, %s160
      %p166 = scmp.eq.s32.totalorder %s18, 0
      %p167 = por %p165, %p166
      %p168 = scmp.ne.s32.totalorder %s157, %s160
      %p169 = scmp.eq.s32.totalorder %s23, 2
      %p170 = por %p168, %p169
      %p171 = scmp.ne.s32.totalorder %s160, %s161
      %p172 = scmp.eq.s32.totalorder %s23, 0
      %p173 = por %p171, %p172
      %p174 = scmp.ne.s32.totalorder %s160, %s161
      %p175 = scmp.eq.s32.totalorder %s24, 2
      %p176 = por %p174, %p175
      %p178 = scmp.ne.s32.totalorder %s161, %s177
      %p179 = scmp.eq.s32.totalorder %s24, 0
      %p180 = por %p178, %p179
      %p181 = scmp.le.s32.totalorder 1, %s18
      %p182 = scmp.lt.s32.totalorder %s18, 4
      %p183 = pnand %p181, %p182
      %p184 = pneg %p183
      // Predicated region
      $region9: #{tpu_custom_call.1} parent=5 // pred_check
        _
      $region10: #{tpu_custom_call.1} parent=5 // pred_check_branch
        %186 = sbr.rel (%p183) target = $region12
      $region11: #{tpu_custom_call.1} parent=5 // pred_region
        %s187 = ssub.s32 %s18, 1
        // Predicated region
        $region13: #{tpu_custom_call.1} parent=11 // pred_check
          %p188 = pneg %p105
        $region14: #{tpu_custom_call.1} parent=11 // pred_check_branch
          %190 = sbr.rel (%p188) target = $region16
        $region15: #{tpu_custom_call.1} parent=11 // pred_region
          _
        $region16: #{tpu_custom_call.1} parent=11 // pred_fallthru
          _
        // Predicated region
        $region17: #{tpu_custom_call.1} parent=11 // pred_check
          %p191 = pneg %p126
        $region18: #{tpu_custom_call.1} parent=11 // pred_check_branch
          %193 = sbr.rel (%p191) target = $region20
        $region19: #{tpu_custom_call.1} parent=11 // pred_region
          %s195 = ssub.s32 4096, 4096
          %196 = vsyncadd [#allocation7], %s195
          %s197 = sshll.u32 [#allocation8], 4
          %s198 = int_to_ptr.vmem [resolvable:$true] %s197
          %203 = dma.hbm_to_vmem [thread:$0]  %s3, 4096, %s198, [#allocation7], 64, 64, 4
        $region20: #{tpu_custom_call.1} parent=11 // pred_fallthru
          _
        // Predicated region
        $region21: #{tpu_custom_call.1} parent=11 // pred_check
          %p204 = pneg %p147
        $region22: #{tpu_custom_call.1} parent=11 // pred_check_branch
          %206 = sbr.rel (%p204) target = $region24
        $region23: #{tpu_custom_call.1} parent=11 // pred_region
          _
        $region24: #{tpu_custom_call.1} parent=11 // pred_fallthru
          _
      $region12: #{tpu_custom_call.1} parent=5 // pred_fallthru
        _
      %p207 = scmp.lt.s32.totalorder %s18, 3
      // Predicated region
      $region25: #{tpu_custom_call.1} parent=5 // pred_check
        %p208 = pneg %p207
      $region26: #{tpu_custom_call.1} parent=5 // pred_check_branch
        %210 = sbr.rel (%p208) target = $region28
      $region27: #{tpu_custom_call.1} parent=5 // pred_region
        // Predicated region
        $region29: #{tpu_custom_call.1} parent=27 // pred_check
          %p211 = pneg %p52
        $region30: #{tpu_custom_call.1} parent=27 // pred_check_branch
          %213 = sbr.rel (%p211) target = $region32
        $region31: #{tpu_custom_call.1} parent=27 // pred_region
          %s214 = sand.u32 %s42, 1
          %s215 = scalar_lea.sflag [#allocation4], %s214
          %s216 = sand.u32 %s42, 1
          %s217 = smul.addr %s216, 256
          %s218 = scalar_lea.vmem [#allocation3], %s217
          %s219 = smul.u32 16, %s25
          %s220 = smul.u32 2, %s26
          %s222 = ssub.s32 4096, 4096
          %223 = vsyncadd %s215, %s222
          %s224 = smul.addr %s219, 6
          %s225 = sadd.s32 %s220, %s224
          %s226 = smul.addr %s225, 128
          %s227 = scalar_lea.hbm %s0, %s226
          %s228 = sshll.u32 %s218, 4
          %s229 = int_to_ptr.vmem [resolvable:$true] %s228
          %234 = dma.hbm_to_vmem [thread:$0]  %s227, 4096, %s229, %s215, 768, 256, 16
        $region32: #{tpu_custom_call.1} parent=27 // pred_fallthru
          _
        // Predicated region
        $region33: #{tpu_custom_call.1} parent=27 // pred_check
          %p235 = pneg %p78
        $region34: #{tpu_custom_call.1} parent=27 // pred_check_branch
          %237 = sbr.rel (%p235) target = $region36
        $region35: #{tpu_custom_call.1} parent=27 // pred_region
          %s238 = sand.u32 %s18, 1
          %s239 = scalar_lea.sflag [#allocation7], %s238
          %s240 = sand.u32 %s68, 1
          %s241 = smul.addr %s240, 512
          %s242 = scalar_lea.vmem [#allocation6], %s241
          %s243 = smul.u32 32, %s26
          %s245 = ssub.s32 8192, 8192
          %246 = vsyncadd %s239, %s245
          %s247 = smul.addr %s243, 4
          %s248 = smul.addr %s247, 64
          %s249 = scalar_lea.hbm %s1, %s248
          %s250 = sshll.u32 %s242, 4
          %s251 = int_to_ptr.vmem [resolvable:$true] %s250
          %256 = dma.hbm_to_vmem [thread:$0]  %s249, 8192, %s251, %s239, 256, 256, 16
        $region36: #{tpu_custom_call.1} parent=27 // pred_fallthru
          _
      $region28: #{tpu_custom_call.1} parent=5 // pred_fallthru
        _
      %p257 = scmp.le.s32.totalorder 1, %s18
      %p258 = scmp.lt.s32.totalorder %s18, 4
      %p259 = pnand %p257, %p258
      %p260 = pneg %p259
      // Predicated region
      $region37: #{tpu_custom_call.1} parent=5 // pred_check
        _
      $region38: #{tpu_custom_call.1} parent=5 // pred_check_branch
        %262 = sbr.rel (%p259) target = $region40
      $region39: #{tpu_custom_call.1} parent=5 // pred_region
        %s263 = ssub.s32 %s18, 1
        %s264 = sand.u32 %s45, 1
        %s265 = scalar_lea.sflag [#allocation4], %s264
        %s266 = sand.u32 %s45, 1
        %s267 = smul.addr %s266, 256
        %s268 = scalar_lea.vmem [#allocation3], %s267
        // Predicated region
        $region41: #{tpu_custom_call.1} parent=39 // pred_check
          %p269 = pneg %p58
        $region42: #{tpu_custom_call.1} parent=39 // pred_check_branch
          %271 = sbr.rel (%p269) target = $region44
        $region43: #{tpu_custom_call.1} parent=39 // pred_region
          %272 = dma.done %s265, 4096
        $region44: #{tpu_custom_call.1} parent=39 // pred_fallthru
          _
        %s273 = sand.u32 %s23, 1
        %s274 = scalar_lea.sflag [#allocation7], %s273
        %s275 = sand.u32 %s71, 1
        %s276 = smul.addr %s275, 512
        %s277 = scalar_lea.vmem [#allocation6], %s276
        // Predicated region
        $region45: #{tpu_custom_call.1} parent=39 // pred_check
          %p278 = pneg %p84
        $region46: #{tpu_custom_call.1} parent=39 // pred_check_branch
          %280 = sbr.rel (%p278) target = $region48
        $region47: #{tpu_custom_call.1} parent=39 // pred_region
          %281 = dma.done %s274, 8192
        $region48: #{tpu_custom_call.1} parent=39 // pred_fallthru
          _
        // Predicated region
        $region49: #{tpu_custom_call.1} parent=39 // pred_check
          %p282 = pneg %p126
        $region50: #{tpu_custom_call.1} parent=39 // pred_check_branch
          %284 = sbr.rel (%p282) target = $region52
        $region51: #{tpu_custom_call.1} parent=39 // pred_region
          %285 = dma.done [#allocation7], 4096
        $region52: #{tpu_custom_call.1} parent=39 // pred_fallthru
          _
        %s286 = sand.u32 %s45, 1
        %s287 = scalar_lea.sflag [#allocation4], %s286
        %s288 = sand.u32 %s45, 1
        %s289 = smul.addr %s288, 256
        %s290 = scalar_lea.vmem [#allocation3], %s289
        %p291 = pneg %p58
        %p292 = pneg %p55
        %s293 = sand.u32 %s23, 1
        %s294 = scalar_lea.sflag [#allocation7], %s293
        %s295 = sand.u32 %s71, 1
        %s296 = smul.addr %s295, 512
        %s297 = scalar_lea.vmem [#allocation6], %s296
        %p298 = pneg %p84
        %p299 = pneg %p81
        %p300 = pneg %p105
        %p301 = pneg %p102
        %p302 = pneg %p126
        %p303 = pneg %p123
        %p304 = pneg %p147
        %p305 = pneg %p144
        %p306 = pneg %p173
        %p307 = pneg %p170
        %s308 = smul.u32 16, %s27
        %s309 = smul.u32 2, %s28
        %s310 = smul.u32 32, %s28
        %s311 = smul.u32 16, %s27
        %p313 = scmp.eq.s32.totalorder %s28, 0
        // Predicated region
        $region53: #{tpu_custom_call.1} parent=39 // pred_check
          %p314 = pneg %p313
        $region54: #{tpu_custom_call.1} parent=39 // pred_check_branch
          %316 = sbr.rel (%p314) target = $region56
        $region55: #{tpu_custom_call.1} parent=39 // pred_region
          %317 = vst [vmem:[#allocation2] sm:$0xff] 0.0
          %318 = vst [vmem:[#allocation2 + $0x8] sm:$0xff] 0.0
          %319 = vst [vmem:[#allocation2 + $0x10] sm:$0xff] 0.0
          %320 = vst [vmem:[#allocation2 + $0x18] sm:$0xff] 0.0
          %321 = vst [vmem:[#allocation2 + $0x20] sm:$0xff] 0.0
          %322 = vst [vmem:[#allocation2 + $0x28] sm:$0xff] 0.0
          %323 = vst [vmem:[#allocation2 + $0x30] sm:$0xff] 0.0
          %324 = vst [vmem:[#allocation2 + $0x38] sm:$0xff] 0.0
          %325 = vst [vmem:[#allocation2 + $0x40] sm:$0xff] 0.0
          %326 = vst [vmem:[#allocation2 + $0x48] sm:$0xff] 0.0
          %327 = vst [vmem:[#allocation2 + $0x50] sm:$0xff] 0.0
          %328 = vst [vmem:[#allocation2 + $0x58] sm:$0xff] 0.0
          %329 = vst [vmem:[#allocation2 + $0x60] sm:$0xff] 0.0
          %330 = vst [vmem:[#allocation2 + $0x68] sm:$0xff] 0.0
          %331 = vst [vmem:[#allocation2 + $0x70] sm:$0xff] 0.0
          %332 = vst [vmem:[#allocation2 + $0x78] sm:$0xff] 0.0
          %333 = vst [vmem:[#allocation2 + $0x80] sm:$0xff] 0.0
          %334 = vst [vmem:[#allocation2 + $0x88] sm:$0xff] 0.0
          %335 = vst [vmem:[#allocation2 + $0x90] sm:$0xff] 0.0
          %336 = vst [vmem:[#allocation2 + $0x98] sm:$0xff] 0.0
          %337 = vst [vmem:[#allocation2 + $0xa0] sm:$0xff] 0.0
          %338 = vst [vmem:[#allocation2 + $0xa8] sm:$0xff] 0.0
          %339 = vst [vmem:[#allocation2 + $0xb0] sm:$0xff] 0.0
          %340 = vst [vmem:[#allocation2 + $0xb8] sm:$0xff] 0.0
          %341 = vst [vmem:[#allocation2 + $0xc0] sm:$0xff] 0.0
          %342 = vst [vmem:[#allocation2 + $0xc8] sm:$0xff] 0.0
          %343 = vst [vmem:[#allocation2 + $0xd0] sm:$0xff] 0.0
          %344 = vst [vmem:[#allocation2 + $0xd8] sm:$0xff] 0.0
          %345 = vst [vmem:[#allocation2 + $0xe0] sm:$0xff] 0.0
          %346 = vst [vmem:[#allocation2 + $0xe8] sm:$0xff] 0.0
          %347 = vst [vmem:[#allocation2 + $0xf0] sm:$0xff] 0.0
          %348 = vst [vmem:[#allocation2 + $0xf8] sm:$0xff] 0.0
          %349 = vst [vmem:[#allocation2 + $0x100] sm:$0xff] 0.0
          %350 = vst [vmem:[#allocation2 + $0x108] sm:$0xff] 0.0
          %351 = vst [vmem:[#allocation2 + $0x110] sm:$0xff] 0.0
          %352 = vst [vmem:[#allocation2 + $0x118] sm:$0xff] 0.0
          %353 = vst [vmem:[#allocation2 + $0x120] sm:$0xff] 0.0
          %354 = vst [vmem:[#allocation2 + $0x128] sm:$0xff] 0.0
          %355 = vst [vmem:[#allocation2 + $0x130] sm:$0xff] 0.0
          %356 = vst [vmem:[#allocation2 + $0x138] sm:$0xff] 0.0
          %357 = vst [vmem:[#allocation2 + $0x140] sm:$0xff] 0.0
          %358 = vst [vmem:[#allocation2 + $0x148] sm:$0xff] 0.0
          %359 = vst [vmem:[#allocation2 + $0x150] sm:$0xff] 0.0
          %360 = vst [vmem:[#allocation2 + $0x158] sm:$0xff] 0.0
          %361 = vst [vmem:[#allocation2 + $0x160] sm:$0xff] 0.0
          %362 = vst [vmem:[#allocation2 + $0x168] sm:$0xff] 0.0
          %363 = vst [vmem:[#allocation2 + $0x170] sm:$0xff] 0.0
          %364 = vst [vmem:[#allocation2 + $0x178] sm:$0xff] 0.0
          %365 = vst [vmem:[#allocation2 + $0x180] sm:$0xff] 0.0
          %366 = vst [vmem:[#allocation2 + $0x188] sm:$0xff] 0.0
          %367 = vst [vmem:[#allocation2 + $0x190] sm:$0xff] 0.0
          %368 = vst [vmem:[#allocation2 + $0x198] sm:$0xff] 0.0
          %369 = vst [vmem:[#allocation2 + $0x1a0] sm:$0xff] 0.0
          %370 = vst [vmem:[#allocation2 + $0x1a8] sm:$0xff] 0.0
          %371 = vst [vmem:[#allocation2 + $0x1b0] sm:$0xff] 0.0
          %372 = vst [vmem:[#allocation2 + $0x1b8] sm:$0xff] 0.0
          %373 = vst [vmem:[#allocation2 + $0x1c0] sm:$0xff] 0.0
          %374 = vst [vmem:[#allocation2 + $0x1c8] sm:$0xff] 0.0
          %375 = vst [vmem:[#allocation2 + $0x1d0] sm:$0xff] 0.0
          %376 = vst [vmem:[#allocation2 + $0x1d8] sm:$0xff] 0.0
          %377 = vst [vmem:[#allocation2 + $0x1e0] sm:$0xff] 0.0
          %378 = vst [vmem:[#allocation2 + $0x1e8] sm:$0xff] 0.0
          %379 = vst [vmem:[#allocation2 + $0x1f0] sm:$0xff] 0.0
          %380 = vst [vmem:[#allocation2 + $0x1f8] sm:$0xff] 0.0
        $region56: #{tpu_custom_call.1} parent=39 // pred_fallthru
          _
        %v381 = vld [vmem:[%s268] sm:$0xff]
        %v382 = vld [vmem:[%s268 + $0x8] sm:$0xff]
        %v383 = vld [vmem:[%s268 + $0x10] sm:$0xff]
        %v384 = vld [vmem:[%s268 + $0x18] sm:$0xff]
        %v385 = vld [vmem:[%s268 + $0x20] sm:$0xff]
        %v386 = vld [vmem:[%s268 + $0x28] sm:$0xff]
        %v387 = vld [vmem:[%s268 + $0x30] sm:$0xff]
        %v388 = vld [vmem:[%s268 + $0x38] sm:$0xff]
        %v389 = vld [vmem:[%s268 + $0x40] sm:$0xff]
        %v390 = vld [vmem:[%s268 + $0x48] sm:$0xff]
        %v391 = vld [vmem:[%s268 + $0x50] sm:$0xff]
        %v392 = vld [vmem:[%s268 + $0x58] sm:$0xff]
        %v393 = vld [vmem:[%s268 + $0x60] sm:$0xff]
        %v394 = vld [vmem:[%s268 + $0x68] sm:$0xff]
        %v395 = vld [vmem:[%s268 + $0x70] sm:$0xff]
        %v396 = vld [vmem:[%s268 + $0x78] sm:$0xff]
        %v397 = vld [vmem:[%s268 + $0x80] sm:$0xff]
        %v398 = vld [vmem:[%s268 + $0x88] sm:$0xff]
        %v399 = vld [vmem:[%s268 + $0x90] sm:$0xff]
        %v400 = vld [vmem:[%s268 + $0x98] sm:$0xff]
        %v401 = vld [vmem:[%s268 + $0xa0] sm:$0xff]
        %v402 = vld [vmem:[%s268 + $0xa8] sm:$0xff]
        %v403 = vld [vmem:[%s268 + $0xb0] sm:$0xff]
        %v404 = vld [vmem:[%s268 + $0xb8] sm:$0xff]
        %v405 = vld [vmem:[%s268 + $0xc0] sm:$0xff]
        %v406 = vld [vmem:[%s268 + $0xc8] sm:$0xff]
        %v407 = vld [vmem:[%s268 + $0xd0] sm:$0xff]
        %v408 = vld [vmem:[%s268 + $0xd8] sm:$0xff]
        %v409 = vld [vmem:[%s268 + $0xe0] sm:$0xff]
        %v410 = vld [vmem:[%s268 + $0xe8] sm:$0xff]
        %v411 = vld [vmem:[%s268 + $0xf0] sm:$0xff]
        %v412 = vld [vmem:[%s268 + $0xf8] sm:$0xff]
        %v413 = vpack.c.bf16 %v383, %v381
        %v414 = vpack.c.bf16 %v384, %v382
        %v415 = vpack.c.bf16 %v387, %v385
        %v416 = vpack.c.bf16 %v388, %v386
        %v417 = vpack.c.bf16 %v391, %v389
        %v418 = vpack.c.bf16 %v392, %v390
        %v419 = vpack.c.bf16 %v395, %v393
        %v420 = vpack.c.bf16 %v396, %v394
        %v421 = vpack.c.bf16 %v399, %v397
        %v422 = vpack.c.bf16 %v400, %v398
        %v423 = vpack.c.bf16 %v403, %v401
        %v424 = vpack.c.bf16 %v404, %v402
        %v425 = vpack.c.bf16 %v407, %v405
        %v426 = vpack.c.bf16 %v408, %v406
        %v427 = vpack.c.bf16 %v411, %v409
        %v428 = vpack.c.bf16 %v412, %v410
        %v429 = vld [vmem:[#allocation2] sm:$0xff]
        %v430 = vld [vmem:[#allocation2 + $0x8] sm:$0xff]
        %v431 = vld [vmem:[#allocation2 + $0x10] sm:$0xff]
        %v432 = vld [vmem:[#allocation2 + $0x18] sm:$0xff]
        %v433 = vld [vmem:[#allocation2 + $0x20] sm:$0xff]
        %v434 = vld [vmem:[#allocation2 + $0x28] sm:$0xff]
        %v435 = vld [vmem:[#allocation2 + $0x30] sm:$0xff]
        %v436 = vld [vmem:[#allocation2 + $0x38] sm:$0xff]
        %v437 = vld [vmem:[#allocation2 + $0x40] sm:$0xff]
        %v438 = vld [vmem:[#allocation2 + $0x48] sm:$0xff]
        %v439 = vld [vmem:[#allocation2 + $0x50] sm:$0xff]
        %v440 = vld [vmem:[#allocation2 + $0x58] sm:$0xff]
        %v441 = vld [vmem:[#allocation2 + $0x60] sm:$0xff]
        %v442 = vld [vmem:[#allocation2 + $0x68] sm:$0xff]
        %v443 = vld [vmem:[#allocation2 + $0x70] sm:$0xff]
        %v444 = vld [vmem:[#allocation2 + $0x78] sm:$0xff]
        %v445 = vld [vmem:[#allocation2 + $0x80] sm:$0xff]
        %v446 = vld [vmem:[#allocation2 + $0x88] sm:$0xff]
        %v447 = vld [vmem:[#allocation2 + $0x90] sm:$0xff]
        %v448 = vld [vmem:[#allocation2 + $0x98] sm:$0xff]
        %v449 = vld [vmem:[#allocation2 + $0xa0] sm:$0xff]
        %v450 = vld [vmem:[#allocation2 + $0xa8] sm:$0xff]
        %v451 = vld [vmem:[#allocation2 + $0xb0] sm:$0xff]
        %v452 = vld [vmem:[#allocation2 + $0xb8] sm:$0xff]
        %v453 = vld [vmem:[#allocation2 + $0xc0] sm:$0xff]
        %v454 = vld [vmem:[#allocation2 + $0xc8] sm:$0xff]
        %v455 = vld [vmem:[#allocation2 + $0xd0] sm:$0xff]
        %v456 = vld [vmem:[#allocation2 + $0xd8] sm:$0xff]
        %v457 = vld [vmem:[#allocation2 + $0xe0] sm:$0xff]
        %v458 = vld [vmem:[#allocation2 + $0xe8] sm:$0xff]
        %v459 = vld [vmem:[#allocation2 + $0xf0] sm:$0xff]
        %v460 = vld [vmem:[#allocation2 + $0xf8] sm:$0xff]
        %v461 = vld [vmem:[#allocation2 + $0x100] sm:$0xff]
        %v462 = vld [vmem:[#allocation2 + $0x108] sm:$0xff]
        %v463 = vld [vmem:[#allocation2 + $0x110] sm:$0xff]
        %v464 = vld [vmem:[#allocation2 + $0x118] sm:$0xff]
        %v465 = vld [vmem:[#allocation2 + $0x120] sm:$0xff]
        %v466 = vld [vmem:[#allocation2 + $0x128] sm:$0xff]
        %v467 = vld [vmem:[#allocation2 + $0x130] sm:$0xff]
        %v468 = vld [vmem:[#allocation2 + $0x138] sm:$0xff]
        %v469 = vld [vmem:[#allocation2 + $0x140] sm:$0xff]
        %v470 = vld [vmem:[#allocation2 + $0x148] sm:$0xff]
        %v471 = vld [vmem:[#allocation2 + $0x150] sm:$0xff]
        %v472 = vld [vmem:[#allocation2 + $0x158] sm:$0xff]
        %v473 = vld [vmem:[#allocation2 + $0x160] sm:$0xff]
        %v474 = vld [vmem:[#allocation2 + $0x168] sm:$0xff]
        %v475 = vld [vmem:[#allocation2 + $0x170] sm:$0xff]
        %v476 = vld [vmem:[#allocation2 + $0x178] sm:$0xff]
        %v477 = vld [vmem:[#allocation2 + $0x180] sm:$0xff]
        %v478 = vld [vmem:[#allocation2 + $0x188] sm:$0xff]
        %v479 = vld [vmem:[#allocation2 + $0x190] sm:$0xff]
        %v480 = vld [vmem:[#allocation2 + $0x198] sm:$0xff]
        %v481 = vld [vmem:[#allocation2 + $0x1a0] sm:$0xff]
        %v482 = vld [vmem:[#allocation2 + $0x1a8] sm:$0xff]
        %v483 = vld [vmem:[#allocation2 + $0x1b0] sm:$0xff]
        %v484 = vld [vmem:[#allocation2 + $0x1b8] sm:$0xff]
        %v485 = vld [vmem:[#allocation2 + $0x1c0] sm:$0xff]
        %v486 = vld [vmem:[#allocation2 + $0x1c8] sm:$0xff]
        %v487 = vld [vmem:[#allocation2 + $0x1d0] sm:$0xff]
        %v488 = vld [vmem:[#allocation2 + $0x1d8] sm:$0xff]
        %v489 = vld [vmem:[#allocation2 + $0x1e0] sm:$0xff]
        %v490 = vld [vmem:[#allocation2 + $0x1e8] sm:$0xff]
        %v491 = vld [vmem:[#allocation2 + $0x1f0] sm:$0xff]
        %v492 = vld [vmem:[#allocation2 + $0x1f8] sm:$0xff]
        %v493 = vld [vmem:[%s277] sm:$0xff]
        %v494 = vld [vmem:[%s277 + $0x8] sm:$0xff]
        %v495 = vld [vmem:[%s277 + $0x10] sm:$0xff]
        %v496 = vld [vmem:[%s277 + $0x18] sm:$0xff]
        %v497 = vld [vmem:[%s277 + $0x20] sm:$0xff]
        %v498 = vld [vmem:[%s277 + $0x28] sm:$0xff]
        %v499 = vld [vmem:[%s277 + $0x30] sm:$0xff]
        %v500 = vld [vmem:[%s277 + $0x38] sm:$0xff]
        %v501 = vld [vmem:[%s277 + $0x40] sm:$0xff]
        %v502 = vld [vmem:[%s277 + $0x48] sm:$0xff]
        %v503 = vld [vmem:[%s277 + $0x50] sm:$0xff]
        %v504 = vld [vmem:[%s277 + $0x58] sm:$0xff]
        %v505 = vld [vmem:[%s277 + $0x60] sm:$0xff]
        %v506 = vld [vmem:[%s277 + $0x68] sm:$0xff]
        %v507 = vld [vmem:[%s277 + $0x70] sm:$0xff]
        %v508 = vld [vmem:[%s277 + $0x78] sm:$0xff]
        %v509 = vld [vmem:[%s277 + $0x80] sm:$0xff]
        %v510 = vld [vmem:[%s277 + $0x88] sm:$0xff]
        %v511 = vld [vmem:[%s277 + $0x90] sm:$0xff]
        %v512 = vld [vmem:[%s277 + $0x98] sm:$0xff]
        %v513 = vld [vmem:[%s277 + $0xa0] sm:$0xff]
        %v514 = vld [vmem:[%s277 + $0xa8] sm:$0xff]
        %v515 = vld [vmem:[%s277 + $0xb0] sm:$0xff]
        %v516 = vld [vmem:[%s277 + $0xb8] sm:$0xff]
        %v517 = vld [vmem:[%s277 + $0xc0] sm:$0xff]
        %v518 = vld [vmem:[%s277 + $0xc8] sm:$0xff]
        %v519 = vld [vmem:[%s277 + $0xd0] sm:$0xff]
        %v520 = vld [vmem:[%s277 + $0xd8] sm:$0xff]
        %v521 = vld [vmem:[%s277 + $0xe0] sm:$0xff]
        %v522 = vld [vmem:[%s277 + $0xe8] sm:$0xff]
        %v523 = vld [vmem:[%s277 + $0xf0] sm:$0xff]
        %v524 = vld [vmem:[%s277 + $0xf8] sm:$0xff]
        %v525 = vld [vmem:[%s277 + $0x100] sm:$0xff]
        %v526 = vld [vmem:[%s277 + $0x108] sm:$0xff]
        %v527 = vld [vmem:[%s277 + $0x110] sm:$0xff]
        %v528 = vld [vmem:[%s277 + $0x118] sm:$0xff]
        %v529 = vld [vmem:[%s277 + $0x120] sm:$0xff]
        %v530 = vld [vmem:[%s277 + $0x128] sm:$0xff]
        %v531 = vld [vmem:[%s277 + $0x130] sm:$0xff]
        %v532 = vld [vmem:[%s277 + $0x138] sm:$0xff]
        %v533 = vld [vmem:[%s277 + $0x140] sm:$0xff]
        %v534 = vld [vmem:[%s277 + $0x148] sm:$0xff]
        %v535 = vld [vmem:[%s277 + $0x150] sm:$0xff]
        %v536 = vld [vmem:[%s277 + $0x158] sm:$0xff]
        %v537 = vld [vmem:[%s277 + $0x160] sm:$0xff]
        %v538 = vld [vmem:[%s277 + $0x168] sm:$0xff]
        %v539 = vld [vmem:[%s277 + $0x170] sm:$0xff]
        %v540 = vld [vmem:[%s277 + $0x178] sm:$0xff]
        %v541 = vld [vmem:[%s277 + $0x180] sm:$0xff]
        %v542 = vld [vmem:[%s277 + $0x188] sm:$0xff]
        %v543 = vld [vmem:[%s277 + $0x190] sm:$0xff]
        %v544 = vld [vmem:[%s277 + $0x198] sm:$0xff]
        %v545 = vld [vmem:[%s277 + $0x1a0] sm:$0xff]
        %v546 = vld [vmem:[%s277 + $0x1a8] sm:$0xff]
        %v547 = vld [vmem:[%s277 + $0x1b0] sm:$0xff]
        %v548 = vld [vmem:[%s277 + $0x1b8] sm:$0xff]
        %v549 = vld [vmem:[%s277 + $0x1c0] sm:$0xff]
        %v550 = vld [vmem:[%s277 + $0x1c8] sm:$0xff]
        %v551 = vld [vmem:[%s277 + $0x1d0] sm:$0xff]
        %v552 = vld [vmem:[%s277 + $0x1d8] sm:$0xff]
        %v553 = vld [vmem:[%s277 + $0x1e0] sm:$0xff]
        %v554 = vld [vmem:[%s277 + $0x1e8] sm:$0xff]
        %v555 = vld [vmem:[%s277 + $0x1f0] sm:$0xff]
        %v556 = vld [vmem:[%s277 + $0x1f8] sm:$0xff]
        %v621 = vunpack.c.l.b16 %v493
        %v622 = vunpack.c.h.b16 %v493
        %v623 = vunpack.c.l.b16 %v494
        %v624 = vunpack.c.h.b16 %v494
        %v625 = vunpack.c.l.b16 %v495
        %v626 = vunpack.c.h.b16 %v495
        %v627 = vunpack.c.l.b16 %v496
        %v628 = vunpack.c.h.b16 %v496
        %v629 = vunpack.c.l.b16 %v497
        %v630 = vunpack.c.h.b16 %v497
        %v631 = vunpack.c.l.b16 %v498
        %v632 = vunpack.c.h.b16 %v498
        %v633 = vunpack.c.l.b16 %v499
        %v634 = vunpack.c.h.b16 %v499
        %v635 = vunpack.c.l.b16 %v500
        %v636 = vunpack.c.h.b16 %v500
        %v637 = vunpack.c.l.b16 %v501
        %v638 = vunpack.c.h.b16 %v501
        %v639 = vunpack.c.l.b16 %v502
        %v640 = vunpack.c.h.b16 %v502
        %v641 = vunpack.c.l.b16 %v503
        %v642 = vunpack.c.h.b16 %v503
        %v643 = vunpack.c.l.b16 %v504
        %v644 = vunpack.c.h.b16 %v504
        %v645 = vunpack.c.l.b16 %v505
        %v646 = vunpack.c.h.b16 %v505
        %v647 = vunpack.c.l.b16 %v506
        %v648 = vunpack.c.h.b16 %v506
        %v649 = vunpack.c.l.b16 %v507
        %v650 = vunpack.c.h.b16 %v507
        %v651 = vunpack.c.l.b16 %v508
        %v652 = vunpack.c.h.b16 %v508
        %v653 = vunpack.c.l.b16 %v509
        %v654 = vunpack.c.h.b16 %v509
        %v655 = vunpack.c.l.b16 %v510
        %v656 = vunpack.c.h.b16 %v510
        %v657 = vunpack.c.l.b16 %v511
        %v658 = vunpack.c.h.b16 %v511
        %v659 = vunpack.c.l.b16 %v512
        %v660 = vunpack.c.h.b16 %v512
        %v661 = vunpack.c.l.b16 %v513
        %v662 = vunpack.c.h.b16 %v513
        %v663 = vunpack.c.l.b16 %v514
        %v664 = vunpack.c.h.b16 %v514
        %v665 = vunpack.c.l.b16 %v515
        %v666 = vunpack.c.h.b16 %v515
        %v667 = vunpack.c.l.b16 %v516
        %v668 = vunpack.c.h.b16 %v516
        %v669 = vunpack.c.l.b16 %v517
        %v670 = vunpack.c.h.b16 %v517
        %v671 = vunpack.c.l.b16 %v518
        %v672 = vunpack.c.h.b16 %v518
        %v673 = vunpack.c.l.b16 %v519
        %v674 = vunpack.c.h.b16 %v519
        %v675 = vunpack.c.l.b16 %v520
        %v676 = vunpack.c.h.b16 %v520
        %v677 = vunpack.c.l.b16 %v521
        %v678 = vunpack.c.h.b16 %v521
        %v679 = vunpack.c.l.b16 %v522
        %v680 = vunpack.c.h.b16 %v522
        %v681 = vunpack.c.l.b16 %v523
        %v682 = vunpack.c.h.b16 %v523
        %v683 = vunpack.c.l.b16 %v524
        %v684 = vunpack.c.h.b16 %v524
        %v685 = vunpack.c.l.b16 %v525
        %v686 = vunpack.c.h.b16 %v525
        %v687 = vunpack.c.l.b16 %v526
        %v688 = vunpack.c.h.b16 %v526
        %v689 = vunpack.c.l.b16 %v527
        %v690 = vunpack.c.h.b16 %v527
        %v691 = vunpack.c.l.b16 %v528
        %v692 = vunpack.c.h.b16 %v528
        %v693 = vunpack.c.l.b16 %v529
        %v694 = vunpack.c.h.b16 %v529
        %v695 = vunpack.c.l.b16 %v530
        %v696 = vunpack.c.h.b16 %v530
        %v697 = vunpack.c.l.b16 %v531
        %v698 = vunpack.c.h.b16 %v531
        %v699 = vunpack.c.l.b16 %v532
        %v700 = vunpack.c.h.b16 %v532
        %v701 = vunpack.c.l.b16 %v533
        %v702 = vunpack.c.h.b16 %v533
        %v703 = vunpack.c.l.b16 %v534
        %v704 = vunpack.c.h.b16 %v534
        %v705 = vunpack.c.l.b16 %v535
        %v706 = vunpack.c.h.b16 %v535
        %v707 = vunpack.c.l.b16 %v536
        %v708 = vunpack.c.h.b16 %v536
        %v709 = vunpack.c.l.b16 %v537
        %v710 = vunpack.c.h.b16 %v537
        %v711 = vunpack.c.l.b16 %v538
        %v712 = vunpack.c.h.b16 %v538
        %v713 = vunpack.c.l.b16 %v539
        %v714 = vunpack.c.h.b16 %v539
        %v715 = vunpack.c.l.b16 %v540
        %v716 = vunpack.c.h.b16 %v540
        %v717 = vunpack.c.l.b16 %v541
        %v718 = vunpack.c.h.b16 %v541
        %v719 = vunpack.c.l.b16 %v542
        %v720 = vunpack.c.h.b16 %v542
        %v721 = vunpack.c.l.b16 %v543
        %v722 = vunpack.c.h.b16 %v543
        %v723 = vunpack.c.l.b16 %v544
        %v724 = vunpack.c.h.b16 %v544
        %v725 = vunpack.c.l.b16 %v545
        %v726 = vunpack.c.h.b16 %v545
        %v727 = vunpack.c.l.b16 %v546
        %v728 = vunpack.c.h.b16 %v546
        %v729 = vunpack.c.l.b16 %v547
        %v730 = vunpack.c.h.b16 %v547
        %v731 = vunpack.c.l.b16 %v548
        %v732 = vunpack.c.h.b16 %v548
        %v733 = vunpack.c.l.b16 %v549
        %v734 = vunpack.c.h.b16 %v549
        %v735 = vunpack.c.l.b16 %v550
        %v736 = vunpack.c.h.b16 %v550
        %v737 = vunpack.c.l.b16 %v551
        %v738 = vunpack.c.h.b16 %v551
        %v739 = vunpack.c.l.b16 %v552
        %v740 = vunpack.c.h.b16 %v552
        %v741 = vunpack.c.l.b16 %v553
        %v742 = vunpack.c.h.b16 %v553
        %v743 = vunpack.c.l.b16 %v554
        %v744 = vunpack.c.h.b16 %v554
        %v745 = vunpack.c.l.b16 %v555
        %v746 = vunpack.c.h.b16 %v555
        %v747 = vunpack.c.l.b16 %v556
        %v748 = vunpack.c.h.b16 %v556
        %v749 = vpack.c.b16 %v625, %v621
        %v750 = vpack.c.b16 %v626, %v622
        %v751 = vpack.c.b16 %v627, %v623
        %v752 = vpack.c.b16 %v628, %v624
        %v753 = vpack.c.b16 %v633, %v629
        %v754 = vpack.c.b16 %v634, %v630
        %v755 = vpack.c.b16 %v635, %v631
        %v756 = vpack.c.b16 %v636, %v632
        %v757 = vpack.c.b16 %v641, %v637
        %v758 = vpack.c.b16 %v642, %v638
        %v759 = vpack.c.b16 %v643, %v639
        %v760 = vpack.c.b16 %v644, %v640
        %v761 = vpack.c.b16 %v649, %v645
        %v762 = vpack.c.b16 %v650, %v646
        %v763 = vpack.c.b16 %v651, %v647
        %v764 = vpack.c.b16 %v652, %v648
        %v765 = vpack.c.b16 %v657, %v653
        %v766 = vpack.c.b16 %v658, %v654
        %v767 = vpack.c.b16 %v659, %v655
        %v768 = vpack.c.b16 %v660, %v656
        %v769 = vpack.c.b16 %v665, %v661
        %v770 = vpack.c.b16 %v666, %v662
        %v771 = vpack.c.b16 %v667, %v663
        %v772 = vpack.c.b16 %v668, %v664
        %v773 = vpack.c.b16 %v673, %v669
        %v774 = vpack.c.b16 %v674, %v670
        %v775 = vpack.c.b16 %v675, %v671
        %v776 = vpack.c.b16 %v676, %v672
        %v777 = vpack.c.b16 %v681, %v677
        %v778 = vpack.c.b16 %v682, %v678
        %v779 = vpack.c.b16 %v683, %v679
        %v780 = vpack.c.b16 %v684, %v680
        %v781 = vpack.c.b16 %v689, %v685
        %v782 = vpack.c.b16 %v690, %v686
        %v783 = vpack.c.b16 %v691, %v687
        %v784 = vpack.c.b16 %v692, %v688
        %v785 = vpack.c.b16 %v697, %v693
        %v786 = vpack.c.b16 %v698, %v694
        %v787 = vpack.c.b16 %v699, %v695
        %v788 = vpack.c.b16 %v700, %v696
        %v789 = vpack.c.b16 %v705, %v701
        %v790 = vpack.c.b16 %v706, %v702
        %v791 = vpack.c.b16 %v707, %v703
        %v792 = vpack.c.b16 %v708, %v704
        %v793 = vpack.c.b16 %v713, %v709
        %v794 = vpack.c.b16 %v714, %v710
        %v795 = vpack.c.b16 %v715, %v711
        %v796 = vpack.c.b16 %v716, %v712
        %v797 = vpack.c.b16 %v721, %v717
        %v798 = vpack.c.b16 %v722, %v718
        %v799 = vpack.c.b16 %v723, %v719
        %v800 = vpack.c.b16 %v724, %v720
        %v801 = vpack.c.b16 %v729, %v725
        %v802 = vpack.c.b16 %v730, %v726
        %v803 = vpack.c.b16 %v731, %v727
        %v804 = vpack.c.b16 %v732, %v728
        %v805 = vpack.c.b16 %v737, %v733
        %v806 = vpack.c.b16 %v738, %v734
        %v807 = vpack.c.b16 %v739, %v735
        %v808 = vpack.c.b16 %v740, %v736
        %v809 = vpack.c.b16 %v745, %v741
        %v810 = vpack.c.b16 %v746, %v742
        %v811 = vpack.c.b16 %v747, %v743
        %v812 = vpack.c.b16 %v748, %v744
        %877 = vmatprep.subr.bf16.mxu0 %v750
        %878 = vmatpush1.bf16.msra.mxu0 %v749
        %879 = vmatprep.subr.bf16.mxu0 %v754
        %880 = vmatpush1.bf16.msra.mxu0 %v753
        %881 = vmatprep.subr.bf16.mxu0 %v758
        %882 = vmatpush1.bf16.msra.mxu0 %v757
        %883 = vmatprep.subr.bf16.mxu0 %v762
        %884 = vmatpush1.bf16.msra.mxu0 %v761
        %885 = vmatprep.subr.bf16.mxu0 %v766
        %886 = vmatpush1.bf16.msra.mxu0 %v765
        %887 = vmatprep.subr.bf16.mxu0 %v770
        %888 = vmatpush1.bf16.msra.mxu0 %v769
        %889 = vmatprep.subr.bf16.mxu0 %v774
        %890 = vmatpush1.bf16.msra.mxu0 %v773
        %891 = vmatprep.subr.bf16.mxu0 %v778
        %892 = vmatpush1.bf16.msra.mxu0 %v777
        %893 = vmatprep.subr.bf16.mxu0 %v782
        %894 = vmatpush1.bf16.msra.mxu0 %v781
        %895 = vmatprep.subr.bf16.mxu0 %v786
        %896 = vmatpush1.bf16.msra.mxu0 %v785
        %897 = vmatprep.subr.bf16.mxu0 %v790
        %898 = vmatpush1.bf16.msra.mxu0 %v789
        %899 = vmatprep.subr.bf16.mxu0 %v794
        %900 = vmatpush1.bf16.msra.mxu0 %v793
        %901 = vmatprep.subr.bf16.mxu0 %v798
        %902 = vmatpush1.bf16.msra.mxu0 %v797
        %903 = vmatprep.subr.bf16.mxu0 %v802
        %904 = vmatpush1.bf16.msra.mxu0 %v801
        %905 = vmatprep.subr.bf16.mxu0 %v806
        %906 = vmatpush1.bf16.msra.mxu0 %v805
        %907 = vmatprep.subr.bf16.mxu0 %v810
        %908 = vmatpush1.bf16.msra.mxu0 %v809
        %909 = vmatprep.mubr.bf16.mxu0 %v414
        %910 = vmatmul.mubr.bf16.gmra.mrb[0].mxu0 %v413
        %v911 = vpop.f32.mrb[0].mxu0
        %v912 = vadd.f32 0.0, %v911
        %v913 = vpop.f32.mrb[0].mxu0
        %v914 = vadd.f32 0.0, %v913
        %v915 = vpop.f32.mrb[0].mxu0
        %v916 = vadd.f32 0.0, %v915
        %v917 = vpop.f32.mrb[0].mxu0
        %v918 = vadd.f32 0.0, %v917
        %919 = vmatprep.mubr.bf16.mxu0 %v416
        %920 = vmatmul.mubr.bf16.gmra.mrb[0].mxu0 %v415
        %v921 = vpop.f32.mrb[0].mxu0
        %v922 = vadd.f32 0.0, %v921
        %v923 = vpop.f32.mrb[0].mxu0
        %v924 = vadd.f32 0.0, %v923
        %v925 = vpop.f32.mrb[0].mxu0
        %v926 = vadd.f32 0.0, %v925
        %v927 = vpop.f32.mrb[0].mxu0
        %v928 = vadd.f32 0.0, %v927
        %929 = vmatprep.mubr.bf16.mxu0 %v418
        %930 = vmatmul.mubr.bf16.gmra.mrb[0].mxu0 %v417
        %v931 = vpop.f32.mrb[0].mxu0
        %v932 = vadd.f32 0.0, %v931
        %v933 = vpop.f32.mrb[0].mxu0
        %v934 = vadd.f32 0.0, %v933
        %v935 = vpop.f32.mrb[0].mxu0
        %v936 = vadd.f32 0.0, %v935
        %v937 = vpop.f32.mrb[0].mxu0
        %v938 = vadd.f32 0.0, %v937
        %939 = vmatprep.mubr.bf16.mxu0 %v420
        %940 = vmatmul.mubr.bf16.gmra.mrb[0].mxu0 %v419
        %v941 = vpop.f32.mrb[0].mxu0
        %v942 = vadd.f32 0.0, %v941
        %v943 = vpop.f32.mrb[0].mxu0
        %v944 = vadd.f32 0.0, %v943
        %v945 = vpop.f32.mrb[0].mxu0
        %v946 = vadd.f32 0.0, %v945
        %v947 = vpop.f32.mrb[0].mxu0
        %v948 = vadd.f32 0.0, %v947
        %949 = vmatprep.mubr.bf16.mxu0 %v422
        %950 = vmatmul.mubr.bf16.gmra.mrb[0].mxu0 %v421
        %v951 = vpop.f32.mrb[0].mxu0
        %v952 = vadd.f32 0.0, %v951
        %v953 = vpop.f32.mrb[0].mxu0
        %v954 = vadd.f32 0.0, %v953
        %v955 = vpop.f32.mrb[0].mxu0
        %v956 = vadd.f32 0.0, %v955
        %v957 = vpop.f32.mrb[0].mxu0
        %v958 = vadd.f32 0.0, %v957
        %959 = vmatprep.mubr.bf16.mxu0 %v424
        %960 = vmatmul.mubr.bf16.gmra.mrb[0].mxu0 %v423
        %v961 = vpop.f32.mrb[0].mxu0
        %v962 = vadd.f32 0.0, %v961
        %v963 = vpop.f32.mrb[0].mxu0
        %v964 = vadd.f32 0.0, %v963
        %v965 = vpop.f32.mrb[0].mxu0
        %v966 = vadd.f32 0.0, %v965
        %v967 = vpop.f32.mrb[0].mxu0
        %v968 = vadd.f32 0.0, %v967
        %969 = vmatprep.mubr.bf16.mxu0 %v426
        %970 = vmatmul.mubr.bf16.gmra.mrb[0].mxu0 %v425
        %v971 = vpop.f32.mrb[0].mxu0
        %v972 = vadd.f32 0.0, %v971
        %v973 = vpop.f32.mrb[0].mxu0
        %v974 = vadd.f32 0.0, %v973
        %v975 = vpop.f32.mrb[0].mxu0
        %v976 = vadd.f32 0.0, %v975
        %v977 = vpop.f32.mrb[0].mxu0
        %v978 = vadd.f32 0.0, %v977
        %979 = vmatprep.mubr.bf16.mxu0 %v428
        %980 = vmatmul.mubr.bf16.gmra.mrb[0].mxu0 %v427
        %v981 = vpop.f32.mrb[0].mxu0
        %v982 = vadd.f32 0.0, %v981
        %v983 = vpop.f32.mrb[0].mxu0
        %v984 = vadd.f32 0.0, %v983
        %v985 = vpop.f32.mrb[0].mxu0
        %v986 = vadd.f32 0.0, %v985
        %v987 = vpop.f32.mrb[0].mxu0
        %v988 = vadd.f32 0.0, %v987
        %989 = vdwg.mxu0
        %990 = vmatprep.subr.bf16.mxu0 %v752
        %991 = vmatpush1.bf16.msra.mxu0 %v751
        %992 = vmatprep.subr.bf16.mxu0 %v756
        %993 = vmatpush1.bf16.msra.mxu0 %v755
        %994 = vmatprep.subr.bf16.mxu0 %v760
        %995 = vmatpush1.bf16.msra.mxu0 %v759
        %996 = vmatprep.subr.bf16.mxu0 %v764
        %997 = vmatpush1.bf16.msra.mxu0 %v763
        %998 = vmatprep.subr.bf16.mxu0 %v768
        %999 = vmatpush1.bf16.msra.mxu0 %v767
        %1000 = vmatprep.subr.bf16.mxu0 %v772
        %1001 = vmatpush1.bf16.msra.mxu0 %v771
        %1002 = vmatprep.subr.bf16.mxu0 %v776
        %1003 = vmatpush1.bf16.msra.mxu0 %v775
        %1004 = vmatprep.subr.bf16.mxu0 %v780
        %1005 = vmatpush1.bf16.msra.mxu0 %v779
        %1006 = vmatprep.subr.bf16.mxu0 %v784
        %1007 = vmatpush1.bf16.msra.mxu0 %v783
        %1008 = vmatprep.subr.bf16.mxu0 %v788
        %1009 = vmatpush1.bf16.msra.mxu0 %v787
        %1010 = vmatprep.subr.bf16.mxu0 %v792
        %1011 = vmatpush1.bf16.msra.mxu0 %v791
        %1012 = vmatprep.subr.bf16.mxu0 %v796
        %1013 = vmatpush1.bf16.msra.mxu0 %v795
        %1014 = vmatprep.subr.bf16.mxu0 %v800
        %1015 = vmatpush1.bf16.msra.mxu0 %v799
        %1016 = vmatprep.subr.bf16.mxu0 %v804
        %1017 = vmatpush1.bf16.msra.mxu0 %v803
        %1018 = vmatprep.subr.bf16.mxu0 %v808
        %1019 = vmatpush1.bf16.msra.mxu0 %v807
        %1020 = vmatprep.subr.bf16.mxu0 %v812
        %1021 = vmatpush1.bf16.msra.mxu0 %v811
        %1022 = vmatprep.mubr.bf16.mxu0 %v414
        %1023 = vmatmul.mubr.bf16.gmra.mrb[0].mxu0 %v413
        %v1024 = vpop.f32.mrb[0].mxu0
        %v1025 = vadd.f32 0.0, %v1024
        %v1026 = vpop.f32.mrb[0].mxu0
        %v1027 = vadd.f32 0.0, %v1026
        %v1028 = vpop.f32.mrb[0].mxu0
        %v1029 = vadd.f32 0.0, %v1028
        %v1030 = vpop.f32.mrb[0].mxu0
        %v1031 = vadd.f32 0.0, %v1030
        %1032 = vmatprep.mubr.bf16.mxu0 %v416
        %1033 = vmatmul.mubr.bf16.gmra.mrb[0].mxu0 %v415
        %v1034 = vpop.f32.mrb[0].mxu0
        %v1035 = vadd.f32 0.0, %v1034
        %v1036 = vpop.f32.mrb[0].mxu0
        %v1037 = vadd.f32 0.0, %v1036
        %v1038 = vpop.f32.mrb[0].mxu0
        %v1039 = vadd.f32 0.0, %v1038
        %v1040 = vpop.f32.mrb[0].mxu0
        %v1041 = vadd.f32 0.0, %v1040
        %1042 = vmatprep.mubr.bf16.mxu0 %v418
        %1043 = vmatmul.mubr.bf16.gmra.mrb[0].mxu0 %v417
        %v1044 = vpop.f32.mrb[0].mxu0
        %v1045 = vadd.f32 0.0, %v1044
        %v1046 = vpop.f32.mrb[0].mxu0
        %v1047 = vadd.f32 0.0, %v1046
        %v1048 = vpop.f32.mrb[0].mxu0
        %v1049 = vadd.f32 0.0, %v1048
        %v1050 = vpop.f32.mrb[0].mxu0
        %v1051 = vadd.f32 0.0, %v1050
        %1052 = vmatprep.mubr.bf16.mxu0 %v420
        %1053 = vmatmul.mubr.bf16.gmra.mrb[0].mxu0 %v419
        %v1054 = vpop.f32.mrb[0].mxu0
        %v1055 = vadd.f32 0.0, %v1054
        %v1056 = vpop.f32.mrb[0].mxu0
        %v1057 = vadd.f32 0.0, %v1056
        %v1058 = vpop.f32.mrb[0].mxu0
        %v1059 = vadd.f32 0.0, %v1058
        %v1060 = vpop.f32.mrb[0].mxu0
        %v1061 = vadd.f32 0.0, %v1060
        %1062 = vmatprep.mubr.bf16.mxu0 %v422
        %1063 = vmatmul.mubr.bf16.gmra.mrb[0].mxu0 %v421
        %v1064 = vpop.f32.mrb[0].mxu0
        %v1065 = vadd.f32 0.0, %v1064
        %v1066 = vpop.f32.mrb[0].mxu0
        %v1067 = vadd.f32 0.0, %v1066
        %v1068 = vpop.f32.mrb[0].mxu0
        %v1069 = vadd.f32 0.0, %v1068
        %v1070 = vpop.f32.mrb[0].mxu0
        %v1071 = vadd.f32 0.0, %v1070
        %1072 = vmatprep.mubr.bf16.mxu0 %v424
        %1073 = vmatmul.mubr.bf16.gmra.mrb[0].mxu0 %v423
        %v1074 = vpop.f32.mrb[0].mxu0
        %v1075 = vadd.f32 0.0, %v1074
        %v1076 = vpop.f32.mrb[0].mxu0
        %v1077 = vadd.f32 0.0, %v1076
        %v1078 = vpop.f32.mrb[0].mxu0
        %v1079 = vadd.f32 0.0, %v1078
        %v1080 = vpop.f32.mrb[0].mxu0
        %v1081 = vadd.f32 0.0, %v1080
        %1082 = vmatprep.mubr.bf16.mxu0 %v426
        %1083 = vmatmul.mubr.bf16.gmra.mrb[0].mxu0 %v425
        %v1084 = vpop.f32.mrb[0].mxu0
        %v1085 = vadd.f32 0.0, %v1084
        %v1086 = vpop.f32.mrb[0].mxu0
        %v1087 = vadd.f32 0.0, %v1086
        %v1088 = vpop.f32.mrb[0].mxu0
        %v1089 = vadd.f32 0.0, %v1088
        %v1090 = vpop.f32.mrb[0].mxu0
        %v1091 = vadd.f32 0.0, %v1090
        %1092 = vmatprep.mubr.bf16.mxu0 %v428
        %1093 = vmatmul.mubr.bf16.gmra.mrb[0].mxu0 %v427
        %v1094 = vpop.f32.mrb[0].mxu0
        %v1095 = vadd.f32 0.0, %v1094
        %v1096 = vpop.f32.mrb[0].mxu0
        %v1097 = vadd.f32 0.0, %v1096
        %v1098 = vpop.f32.mrb[0].mxu0
        %v1099 = vadd.f32 0.0, %v1098
        %v1100 = vpop.f32.mrb[0].mxu0
        %v1101 = vadd.f32 0.0, %v1100
        %1102 = vdwg.mxu0
        %v1103 = vadd.f32 %v429, %v912
        %v1104 = vadd.f32 %v430, %v914
        %v1105 = vadd.f32 %v431, %v1025
        %v1106 = vadd.f32 %v432, %v1027
        %v1107 = vadd.f32 %v433, %v916
        %v1108 = vadd.f32 %v434, %v918
        %v1109 = vadd.f32 %v435, %v1029
        %v1110 = vadd.f32 %v436, %v1031
        %v1111 = vadd.f32 %v437, %v922
        %v1112 = vadd.f32 %v438, %v924
        %v1113 = vadd.f32 %v439, %v1035
        %v1114 = vadd.f32 %v440, %v1037
        %v1115 = vadd.f32 %v441, %v926
        %v1116 = vadd.f32 %v442, %v928
        %v1117 = vadd.f32 %v443, %v1039
        %v1118 = vadd.f32 %v444, %v1041
        %v1119 = vadd.f32 %v445, %v932
        %v1120 = vadd.f32 %v446, %v934
        %v1121 = vadd.f32 %v447, %v1045
        %v1122 = vadd.f32 %v448, %v1047
        %v1123 = vadd.f32 %v449, %v936
        %v1124 = vadd.f32 %v450, %v938
        %v1125 = vadd.f32 %v451, %v1049
        %v1126 = vadd.f32 %v452, %v1051
        %v1127 = vadd.f32 %v453, %v942
        %v1128 = vadd.f32 %v454, %v944
        %v1129 = vadd.f32 %v455, %v1055
        %v1130 = vadd.f32 %v456, %v1057
        %v1131 = vadd.f32 %v457, %v946
        %v1132 = vadd.f32 %v458, %v948
        %v1133 = vadd.f32 %v459, %v1059
        %v1134 = vadd.f32 %v460, %v1061
        %v1135 = vadd.f32 %v461, %v952
        %v1136 = vadd.f32 %v462, %v954
        %v1137 = vadd.f32 %v463, %v1065
        %v1138 = vadd.f32 %v464, %v1067
        %v1139 = vadd.f32 %v465, %v956
        %v1140 = vadd.f32 %v466, %v958
        %v1141 = vadd.f32 %v467, %v1069
        %v1142 = vadd.f32 %v468, %v1071
        %v1143 = vadd.f32 %v469, %v962
        %v1144 = vadd.f32 %v470, %v964
        %v1145 = vadd.f32 %v471, %v1075
        %v1146 = vadd.f32 %v472, %v1077
        %v1147 = vadd.f32 %v473, %v966
        %v1148 = vadd.f32 %v474, %v968
        %v1149 = vadd.f32 %v475, %v1079
        %v1150 = vadd.f32 %v476, %v1081
        %v1151 = vadd.f32 %v477, %v972
        %v1152 = vadd.f32 %v478, %v974
        %v1153 = vadd.f32 %v479, %v1085
        %v1154 = vadd.f32 %v480, %v1087
        %v1155 = vadd.f32 %v481, %v976
        %v1156 = vadd.f32 %v482, %v978
        %v1157 = vadd.f32 %v483, %v1089
        %v1158 = vadd.f32 %v484, %v1091
        %v1159 = vadd.f32 %v485, %v982
        %v1160 = vadd.f32 %v486, %v984
        %v1161 = vadd.f32 %v487, %v1095
        %v1162 = vadd.f32 %v488, %v1097
        %v1163 = vadd.f32 %v489, %v986
        %v1164 = vadd.f32 %v490, %v988
        %v1165 = vadd.f32 %v491, %v1099
        %v1166 = vadd.f32 %v492, %v1101
        %1167 = vst [vmem:[#allocation2] sm:$0xff] %v1103
        %1168 = vst [vmem:[#allocation2 + $0x8] sm:$0xff] %v1104
        %1169 = vst [vmem:[#allocation2 + $0x10] sm:$0xff] %v1105
        %1170 = vst [vmem:[#allocation2 + $0x18] sm:$0xff] %v1106
        %1171 = vst [vmem:[#allocation2 + $0x20] sm:$0xff] %v1107
        %1172 = vst [vmem:[#allocation2 + $0x28] sm:$0xff] %v1108
        %1173 = vst [vmem:[#allocation2 + $0x30] sm:$0xff] %v1109
        %1174 = vst [vmem:[#allocation2 + $0x38] sm:$0xff] %v1110
        %1175 = vst [vmem:[#allocation2 + $0x40] sm:$0xff] %v1111
        %1176 = vst [vmem:[#allocation2 + $0x48] sm:$0xff] %v1112
        %1177 = vst [vmem:[#allocation2 + $0x50] sm:$0xff] %v1113
        %1178 = vst [vmem:[#allocation2 + $0x58] sm:$0xff] %v1114
        %1179 = vst [vmem:[#allocation2 + $0x60] sm:$0xff] %v1115
        %1180 = vst [vmem:[#allocation2 + $0x68] sm:$0xff] %v1116
        %1181 = vst [vmem:[#allocation2 + $0x70] sm:$0xff] %v1117
        %1182 = vst [vmem:[#allocation2 + $0x78] sm:$0xff] %v1118
        %1183 = vst [vmem:[#allocation2 + $0x80] sm:$0xff] %v1119
        %1184 = vst [vmem:[#allocation2 + $0x88] sm:$0xff] %v1120
        %1185 = vst [vmem:[#allocation2 + $0x90] sm:$0xff] %v1121
        %1186 = vst [vmem:[#allocation2 + $0x98] sm:$0xff] %v1122
        %1187 = vst [vmem:[#allocation2 + $0xa0] sm:$0xff] %v1123
        %1188 = vst [vmem:[#allocation2 + $0xa8] sm:$0xff] %v1124
        %1189 = vst [vmem:[#allocation2 + $0xb0] sm:$0xff] %v1125
        %1190 = vst [vmem:[#allocation2 + $0xb8] sm:$0xff] %v1126
        %1191 = vst [vmem:[#allocation2 + $0xc0] sm:$0xff] %v1127
        %1192 = vst [vmem:[#allocation2 + $0xc8] sm:$0xff] %v1128
        %1193 = vst [vmem:[#allocation2 + $0xd0] sm:$0xff] %v1129
        %1194 = vst [vmem:[#allocation2 + $0xd8] sm:$0xff] %v1130
        %1195 = vst [vmem:[#allocation2 + $0xe0] sm:$0xff] %v1131
        %1196 = vst [vmem:[#allocation2 + $0xe8] sm:$0xff] %v1132
        %1197 = vst [vmem:[#allocation2 + $0xf0] sm:$0xff] %v1133
        %1198 = vst [vmem:[#allocation2 + $0xf8] sm:$0xff] %v1134
        %1199 = vst [vmem:[#allocation2 + $0x100] sm:$0xff] %v1135
        %1200 = vst [vmem:[#allocation2 + $0x108] sm:$0xff] %v1136
        %1201 = vst [vmem:[#allocation2 + $0x110] sm:$0xff] %v1137
        %1202 = vst [vmem:[#allocation2 + $0x118] sm:$0xff] %v1138
        %1203 = vst [vmem:[#allocation2 + $0x120] sm:$0xff] %v1139
        %1204 = vst [vmem:[#allocation2 + $0x128] sm:$0xff] %v1140
        %1205 = vst [vmem:[#allocation2 + $0x130] sm:$0xff] %v1141
        %1206 = vst [vmem:[#allocation2 + $0x138] sm:$0xff] %v1142
        %1207 = vst [vmem:[#allocation2 + $0x140] sm:$0xff] %v1143
        %1208 = vst [vmem:[#allocation2 + $0x148] sm:$0xff] %v1144
        %1209 = vst [vmem:[#allocation2 + $0x150] sm:$0xff] %v1145
        %1210 = vst [vmem:[#allocation2 + $0x158] sm:$0xff] %v1146
        %1211 = vst [vmem:[#allocation2 + $0x160] sm:$0xff] %v1147
        %1212 = vst [vmem:[#allocation2 + $0x168] sm:$0xff] %v1148
        %1213 = vst [vmem:[#allocation2 + $0x170] sm:$0xff] %v1149
        %1214 = vst [vmem:[#allocation2 + $0x178] sm:$0xff] %v1150
        %1215 = vst [vmem:[#allocation2 + $0x180] sm:$0xff] %v1151
        %1216 = vst [vmem:[#allocation2 + $0x188] sm:$0xff] %v1152
        %1217 = vst [vmem:[#allocation2 + $0x190] sm:$0xff] %v1153
        %1218 = vst [vmem:[#allocation2 + $0x198] sm:$0xff] %v1154
        %1219 = vst [vmem:[#allocation2 + $0x1a0] sm:$0xff] %v1155
        %1220 = vst [vmem:[#allocation2 + $0x1a8] sm:$0xff] %v1156
        %1221 = vst [vmem:[#allocation2 + $0x1b0] sm:$0xff] %v1157
        %1222 = vst [vmem:[#allocation2 + $0x1b8] sm:$0xff] %v1158
        %1223 = vst [vmem:[#allocation2 + $0x1c0] sm:$0xff] %v1159
        %1224 = vst [vmem:[#allocation2 + $0x1c8] sm:$0xff] %v1160
        %1225 = vst [vmem:[#allocation2 + $0x1d0] sm:$0xff] %v1161
        %1226 = vst [vmem:[#allocation2 + $0x1d8] sm:$0xff] %v1162
        %1227 = vst [vmem:[#allocation2 + $0x1e0] sm:$0xff] %v1163
        %1228 = vst [vmem:[#allocation2 + $0x1e8] sm:$0xff] %v1164
        %1229 = vst [vmem:[#allocation2 + $0x1f0] sm:$0xff] %v1165
        %1230 = vst [vmem:[#allocation2 + $0x1f8] sm:$0xff] %v1166
        %p1231 = scmp.eq.s32.totalorder %s28, 2
        // Predicated region
        $region57: #{tpu_custom_call.1} parent=39 // pred_check
          %p1232 = pneg %p1231
        $region58: #{tpu_custom_call.1} parent=39 // pred_check_branch
          %1234 = sbr.rel (%p1232) target = $region60
        $region59: #{tpu_custom_call.1} parent=39 // pred_region
          %v1235 = vld [vmem:[#allocation2] sm:$0xff]
          %v1236 = vld [vmem:[#allocation2 + $0x8] sm:$0xff]
          %v1237 = vld [vmem:[#allocation2 + $0x10] sm:$0xff]
          %v1238 = vld [vmem:[#allocation2 + $0x18] sm:$0xff]
          %v1239 = vld [vmem:[#allocation2 + $0x20] sm:$0xff]
          %v1240 = vld [vmem:[#allocation2 + $0x28] sm:$0xff]
          %v1241 = vld [vmem:[#allocation2 + $0x30] sm:$0xff]
          %v1242 = vld [vmem:[#allocation2 + $0x38] sm:$0xff]
          %v1243 = vld [vmem:[#allocation2 + $0x40] sm:$0xff]
          %v1244 = vld [vmem:[#allocation2 + $0x48] sm:$0xff]
          %v1245 = vld [vmem:[#allocation2 + $0x50] sm:$0xff]
          %v1246 = vld [vmem:[#allocation2 + $0x58] sm:$0xff]
          %v1247 = vld [vmem:[#allocation2 + $0x60] sm:$0xff]
          %v1248 = vld [vmem:[#allocation2 + $0x68] sm:$0xff]
          %v1249 = vld [vmem:[#allocation2 + $0x70] sm:$0xff]
          %v1250 = vld [vmem:[#allocation2 + $0x78] sm:$0xff]
          %v1251 = vld [vmem:[#allocation2 + $0x80] sm:$0xff]
          %v1252 = vld [vmem:[#allocation2 + $0x88] sm:$0xff]
          %v1253 = vld [vmem:[#allocation2 + $0x90] sm:$0xff]
          %v1254 = vld [vmem:[#allocation2 + $0x98] sm:$0xff]
          %v1255 = vld [vmem:[#allocation2 + $0xa0] sm:$0xff]
          %v1256 = vld [vmem:[#allocation2 + $0xa8] sm:$0xff]
          %v1257 = vld [vmem:[#allocation2 + $0xb0] sm:$0xff]
          %v1258 = vld [vmem:[#allocation2 + $0xb8] sm:$0xff]
          %v1259 = vld [vmem:[#allocation2 + $0xc0] sm:$0xff]
          %v1260 = vld [vmem:[#allocation2 + $0xc8] sm:$0xff]
          %v1261 = vld [vmem:[#allocation2 + $0xd0] sm:$0xff]
          %v1262 = vld [vmem:[#allocation2 + $0xd8] sm:$0xff]
          %v1263 = vld [vmem:[#allocation2 + $0xe0] sm:$0xff]
          %v1264 = vld [vmem:[#allocation2 + $0xe8] sm:$0xff]
          %v1265 = vld [vmem:[#allocation2 + $0xf0] sm:$0xff]
          %v1266 = vld [vmem:[#allocation2 + $0xf8] sm:$0xff]
          %v1267 = vld [vmem:[#allocation2 + $0x100] sm:$0xff]
          %v1268 = vld [vmem:[#allocation2 + $0x108] sm:$0xff]
          %v1269 = vld [vmem:[#allocation2 + $0x110] sm:$0xff]
          %v1270 = vld [vmem:[#allocation2 + $0x118] sm:$0xff]
          %v1271 = vld [vmem:[#allocation2 + $0x120] sm:$0xff]
          %v1272 = vld [vmem:[#allocation2 + $0x128] sm:$0xff]
          %v1273 = vld [vmem:[#allocation2 + $0x130] sm:$0xff]
          %v1274 = vld [vmem:[#allocation2 + $0x138] sm:$0xff]
          %v1275 = vld [vmem:[#allocation2 + $0x140] sm:$0xff]
          %v1276 = vld [vmem:[#allocation2 + $0x148] sm:$0xff]
          %v1277 = vld [vmem:[#allocation2 + $0x150] sm:$0xff]
          %v1278 = vld [vmem:[#allocation2 + $0x158] sm:$0xff]
          %v1279 = vld [vmem:[#allocation2 + $0x160] sm:$0xff]
          %v1280 = vld [vmem:[#allocation2 + $0x168] sm:$0xff]
          %v1281 = vld [vmem:[#allocation2 + $0x170] sm:$0xff]
          %v1282 = vld [vmem:[#allocation2 + $0x178] sm:$0xff]
          %v1283 = vld [vmem:[#allocation2 + $0x180] sm:$0xff]
          %v1284 = vld [vmem:[#allocation2 + $0x188] sm:$0xff]
          %v1285 = vld [vmem:[#allocation2 + $0x190] sm:$0xff]
          %v1286 = vld [vmem:[#allocation2 + $0x198] sm:$0xff]
          %v1287 = vld [vmem:[#allocation2 + $0x1a0] sm:$0xff]
          %v1288 = vld [vmem:[#allocation2 + $0x1a8] sm:$0xff]
          %v1289 = vld [vmem:[#allocation2 + $0x1b0] sm:$0xff]
          %v1290 = vld [vmem:[#allocation2 + $0x1b8] sm:$0xff]
          %v1291 = vld [vmem:[#allocation2 + $0x1c0] sm:$0xff]
          %v1292 = vld [vmem:[#allocation2 + $0x1c8] sm:$0xff]
          %v1293 = vld [vmem:[#allocation2 + $0x1d0] sm:$0xff]
          %v1294 = vld [vmem:[#allocation2 + $0x1d8] sm:$0xff]
          %v1295 = vld [vmem:[#allocation2 + $0x1e0] sm:$0xff]
          %v1296 = vld [vmem:[#allocation2 + $0x1e8] sm:$0xff]
          %v1297 = vld [vmem:[#allocation2 + $0x1f0] sm:$0xff]
          %v1298 = vld [vmem:[#allocation2 + $0x1f8] sm:$0xff]
          %v1299 = vld [vmem:[%s2] sm:$0xf]
          %v1301 = vlaneseq
          %v1302 = vshrl.u32 %v1301, 7
          %v1303 = vsub.s32 0, %v1302
          %v1304 = vrot.slane %v1299, %v1303
          %v1305 = vlaneseq
          %v1306 = vshrl.u32 %v1305, 7
          %v1307 = vsub.s32 1, %v1306
          %v1308 = vrot.slane %v1299, %v1307
          %v1309 = vlaneseq
          %v1310 = vshrl.u32 %v1309, 7
          %v1311 = vsub.s32 2, %v1310
          %v1312 = vrot.slane %v1299, %v1311
          %v1313 = vlaneseq
          %v1314 = vshrl.u32 %v1313, 7
          %v1315 = vsub.s32 3, %v1314
          %v1316 = vrot.slane %v1299, %v1315
          %v1321 = vadd.f32 %v1235, %v1304
          %v1322 = vadd.f32 %v1236, %v1308
          %v1323 = vadd.f32 %v1237, %v1312
          %v1324 = vadd.f32 %v1238, %v1316
          %v1325 = vadd.f32 %v1239, %v1304
          %v1326 = vadd.f32 %v1240, %v1308
          %v1327 = vadd.f32 %v1241, %v1312
          %v1328 = vadd.f32 %v1242, %v1316
          %v1329 = vadd.f32 %v1243, %v1304
          %v1330 = vadd.f32 %v1244, %v1308
          %v1331 = vadd.f32 %v1245, %v1312
          %v1332 = vadd.f32 %v1246, %v1316
          %v1333 = vadd.f32 %v1247, %v1304
          %v1334 = vadd.f32 %v1248, %v1308
          %v1335 = vadd.f32 %v1249, %v1312
          %v1336 = vadd.f32 %v1250, %v1316
          %v1337 = vadd.f32 %v1251, %v1304
          %v1338 = vadd.f32 %v1252, %v1308
          %v1339 = vadd.f32 %v1253, %v1312
          %v1340 = vadd.f32 %v1254, %v1316
          %v1341 = vadd.f32 %v1255, %v1304
          %v1342 = vadd.f32 %v1256, %v1308
          %v1343 = vadd.f32 %v1257, %v1312
          %v1344 = vadd.f32 %v1258, %v1316
          %v1345 = vadd.f32 %v1259, %v1304
          %v1346 = vadd.f32 %v1260, %v1308
          %v1347 = vadd.f32 %v1261, %v1312
          %v1348 = vadd.f32 %v1262, %v1316
          %v1349 = vadd.f32 %v1263, %v1304
          %v1350 = vadd.f32 %v1264, %v1308
          %v1351 = vadd.f32 %v1265, %v1312
          %v1352 = vadd.f32 %v1266, %v1316
          %v1353 = vadd.f32 %v1267, %v1304
          %v1354 = vadd.f32 %v1268, %v1308
          %v1355 = vadd.f32 %v1269, %v1312
          %v1356 = vadd.f32 %v1270, %v1316
          %v1357 = vadd.f32 %v1271, %v1304
          %v1358 = vadd.f32 %v1272, %v1308
          %v1359 = vadd.f32 %v1273, %v1312
          %v1360 = vadd.f32 %v1274, %v1316
          %v1361 = vadd.f32 %v1275, %v1304
          %v1362 = vadd.f32 %v1276, %v1308
          %v1363 = vadd.f32 %v1277, %v1312
          %v1364 = vadd.f32 %v1278, %v1316
          %v1365 = vadd.f32 %v1279, %v1304
          %v1366 = vadd.f32 %v1280, %v1308
          %v1367 = vadd.f32 %v1281, %v1312
          %v1368 = vadd.f32 %v1282, %v1316
          %v1369 = vadd.f32 %v1283, %v1304
          %v1370 = vadd.f32 %v1284, %v1308
          %v1371 = vadd.f32 %v1285, %v1312
          %v1372 = vadd.f32 %v1286, %v1316
          %v1373 = vadd.f32 %v1287, %v1304
          %v1374 = vadd.f32 %v1288, %v1308
          %v1375 = vadd.f32 %v1289, %v1312
          %v1376 = vadd.f32 %v1290, %v1316
          %v1377 = vadd.f32 %v1291, %v1304
          %v1378 = vadd.f32 %v1292, %v1308
          %v1379 = vadd.f32 %v1293, %v1312
          %v1380 = vadd.f32 %v1294, %v1316
          %v1381 = vadd.f32 %v1295, %v1304
          %v1382 = vadd.f32 %v1296, %v1308
          %v1383 = vadd.f32 %v1297, %v1312
          %v1384 = vadd.f32 %v1298, %v1316
          %v1385 = vmax.f32 %v1321, 0.0
          %v1386 = vmax.f32 %v1322, 0.0
          %v1387 = vmax.f32 %v1323, 0.0
          %v1388 = vmax.f32 %v1324, 0.0
          %v1389 = vmax.f32 %v1325, 0.0
          %v1390 = vmax.f32 %v1326, 0.0
          %v1391 = vmax.f32 %v1327, 0.0
          %v1392 = vmax.f32 %v1328, 0.0
          %v1393 = vmax.f32 %v1329, 0.0
          %v1394 = vmax.f32 %v1330, 0.0
          %v1395 = vmax.f32 %v1331, 0.0
          %v1396 = vmax.f32 %v1332, 0.0
          %v1397 = vmax.f32 %v1333, 0.0
          %v1398 = vmax.f32 %v1334, 0.0
          %v1399 = vmax.f32 %v1335, 0.0
          %v1400 = vmax.f32 %v1336, 0.0
          %v1401 = vmax.f32 %v1337, 0.0
          %v1402 = vmax.f32 %v1338, 0.0
          %v1403 = vmax.f32 %v1339, 0.0
          %v1404 = vmax.f32 %v1340, 0.0
          %v1405 = vmax.f32 %v1341, 0.0
          %v1406 = vmax.f32 %v1342, 0.0
          %v1407 = vmax.f32 %v1343, 0.0
          %v1408 = vmax.f32 %v1344, 0.0
          %v1409 = vmax.f32 %v1345, 0.0
          %v1410 = vmax.f32 %v1346, 0.0
          %v1411 = vmax.f32 %v1347, 0.0
          %v1412 = vmax.f32 %v1348, 0.0
          %v1413 = vmax.f32 %v1349, 0.0
          %v1414 = vmax.f32 %v1350, 0.0
          %v1415 = vmax.f32 %v1351, 0.0
          %v1416 = vmax.f32 %v1352, 0.0
          %v1417 = vmax.f32 %v1353, 0.0
          %v1418 = vmax.f32 %v1354, 0.0
          %v1419 = vmax.f32 %v1355, 0.0
          %v1420 = vmax.f32 %v1356, 0.0
          %v1421 = vmax.f32 %v1357, 0.0
          %v1422 = vmax.f32 %v1358, 0.0
          %v1423 = vmax.f32 %v1359, 0.0
          %v1424 = vmax.f32 %v1360, 0.0
          %v1425 = vmax.f32 %v1361, 0.0
          %v1426 = vmax.f32 %v1362, 0.0
          %v1427 = vmax.f32 %v1363, 0.0
          %v1428 = vmax.f32 %v1364, 0.0
          %v1429 = vmax.f32 %v1365, 0.0
          %v1430 = vmax.f32 %v1366, 0.0
          %v1431 = vmax.f32 %v1367, 0.0
          %v1432 = vmax.f32 %v1368, 0.0
          %v1433 = vmax.f32 %v1369, 0.0
          %v1434 = vmax.f32 %v1370, 0.0
          %v1435 = vmax.f32 %v1371, 0.0
          %v1436 = vmax.f32 %v1372, 0.0
          %v1437 = vmax.f32 %v1373, 0.0
          %v1438 = vmax.f32 %v1374, 0.0
          %v1439 = vmax.f32 %v1375, 0.0
          %v1440 = vmax.f32 %v1376, 0.0
          %v1441 = vmax.f32 %v1377, 0.0
          %v1442 = vmax.f32 %v1378, 0.0
          %v1443 = vmax.f32 %v1379, 0.0
          %v1444 = vmax.f32 %v1380, 0.0
          %v1445 = vmax.f32 %v1381, 0.0
          %v1446 = vmax.f32 %v1382, 0.0
          %v1447 = vmax.f32 %v1383, 0.0
          %v1448 = vmax.f32 %v1384, 0.0
          %v1449 = vpack.c.bf16 %v1389, %v1385
          %v1450 = vpack.c.bf16 %v1390, %v1386
          %v1451 = vpack.c.bf16 %v1391, %v1387
          %v1452 = vpack.c.bf16 %v1392, %v1388
          %v1453 = vpack.c.bf16 %v1397, %v1393
          %v1454 = vpack.c.bf16 %v1398, %v1394
          %v1455 = vpack.c.bf16 %v1399, %v1395
          %v1456 = vpack.c.bf16 %v1400, %v1396
          %v1457 = vpack.c.bf16 %v1405, %v1401
          %v1458 = vpack.c.bf16 %v1406, %v1402
          %v1459 = vpack.c.bf16 %v1407, %v1403
          %v1460 = vpack.c.bf16 %v1408, %v1404
          %v1461 = vpack.c.bf16 %v1413, %v1409
          %v1462 = vpack.c.bf16 %v1414, %v1410
          %v1463 = vpack.c.bf16 %v1415, %v1411
          %v1464 = vpack.c.bf16 %v1416, %v1412
          %v1465 = vpack.c.bf16 %v1421, %v1417
          %v1466 = vpack.c.bf16 %v1422, %v1418
          %v1467 = vpack.c.bf16 %v1423, %v1419
          %v1468 = vpack.c.bf16 %v1424, %v1420
          %v1469 = vpack.c.bf16 %v1429, %v1425
          %v1470 = vpack.c.bf16 %v1430, %v1426
          %v1471 = vpack.c.bf16 %v1431, %v1427
          %v1472 = vpack.c.bf16 %v1432, %v1428
          %v1473 = vpack.c.bf16 %v1437, %v1433
          %v1474 = vpack.c.bf16 %v1438, %v1434
          %v1475 = vpack.c.bf16 %v1439, %v1435
          %v1476 = vpack.c.bf16 %v1440, %v1436
          %v1477 = vpack.c.bf16 %v1445, %v1441
          %v1478 = vpack.c.bf16 %v1446, %v1442
          %v1479 = vpack.c.bf16 %v1447, %v1443
          %v1480 = vpack.c.bf16 %v1448, %v1444
          %v1481 = vld [vmem:[#allocation8] sm:$0xf]
          %v1482 = vld [vmem:[#allocation8 + $0x4] sm:$0xf]
          %v1483 = vld [vmem:[#allocation8 + $0x8] sm:$0xf]
          %v1484 = vld [vmem:[#allocation8 + $0xc] sm:$0xf]
          %v1485 = vld [vmem:[#allocation8 + $0x10] sm:$0xf]
          %v1486 = vld [vmem:[#allocation8 + $0x14] sm:$0xf]
          %v1487 = vld [vmem:[#allocation8 + $0x18] sm:$0xf]
          %v1488 = vld [vmem:[#allocation8 + $0x1c] sm:$0xf]
          %v1489 = vld [vmem:[#allocation8 + $0x20] sm:$0xf]
          %v1490 = vld [vmem:[#allocation8 + $0x24] sm:$0xf]
          %v1491 = vld [vmem:[#allocation8 + $0x28] sm:$0xf]
          %v1492 = vld [vmem:[#allocation8 + $0x2c] sm:$0xf]
          %v1493 = vld [vmem:[#allocation8 + $0x30] sm:$0xf]
          %v1494 = vld [vmem:[#allocation8 + $0x34] sm:$0xf]
          %v1495 = vld [vmem:[#allocation8 + $0x38] sm:$0xf]
          %v1496 = vld [vmem:[#allocation8 + $0x3c] sm:$0xf]
          %v1497 = vld [vmem:[#allocation8 + $0x40] sm:$0xf]
          %v1498 = vld [vmem:[#allocation8 + $0x44] sm:$0xf]
          %v1499 = vld [vmem:[#allocation8 + $0x48] sm:$0xf]
          %v1500 = vld [vmem:[#allocation8 + $0x4c] sm:$0xf]
          %v1501 = vld [vmem:[#allocation8 + $0x50] sm:$0xf]
          %v1502 = vld [vmem:[#allocation8 + $0x54] sm:$0xf]
          %v1503 = vld [vmem:[#allocation8 + $0x58] sm:$0xf]
          %v1504 = vld [vmem:[#allocation8 + $0x5c] sm:$0xf]
          %v1505 = vld [vmem:[#allocation8 + $0x60] sm:$0xf]
          %v1506 = vld [vmem:[#allocation8 + $0x64] sm:$0xf]
          %v1507 = vld [vmem:[#allocation8 + $0x68] sm:$0xf]
          %v1508 = vld [vmem:[#allocation8 + $0x6c] sm:$0xf]
          %v1509 = vld [vmem:[#allocation8 + $0x70] sm:$0xf]
          %v1510 = vld [vmem:[#allocation8 + $0x74] sm:$0xf]
          %v1511 = vld [vmem:[#allocation8 + $0x78] sm:$0xf]
          %v1512 = vld [vmem:[#allocation8 + $0x7c] sm:$0xf]
          %v1513 = vld [vmem:[#allocation8 + $0x80] sm:$0xf]
          %v1514 = vld [vmem:[#allocation8 + $0x84] sm:$0xf]
          %v1515 = vld [vmem:[#allocation8 + $0x88] sm:$0xf]
          %v1516 = vld [vmem:[#allocation8 + $0x8c] sm:$0xf]
          %v1517 = vld [vmem:[#allocation8 + $0x90] sm:$0xf]
          %v1518 = vld [vmem:[#allocation8 + $0x94] sm:$0xf]
          %v1519 = vld [vmem:[#allocation8 + $0x98] sm:$0xf]
          %v1520 = vld [vmem:[#allocation8 + $0x9c] sm:$0xf]
          %v1521 = vld [vmem:[#allocation8 + $0xa0] sm:$0xf]
          %v1522 = vld [vmem:[#allocation8 + $0xa4] sm:$0xf]
          %v1523 = vld [vmem:[#allocation8 + $0xa8] sm:$0xf]
          %v1524 = vld [vmem:[#allocation8 + $0xac] sm:$0xf]
          %v1525 = vld [vmem:[#allocation8 + $0xb0] sm:$0xf]
          %v1526 = vld [vmem:[#allocation8 + $0xb4] sm:$0xf]
          %v1527 = vld [vmem:[#allocation8 + $0xb8] sm:$0xf]
          %v1528 = vld [vmem:[#allocation8 + $0xbc] sm:$0xf]
          %v1529 = vld [vmem:[#allocation8 + $0xc0] sm:$0xf]
          %v1530 = vld [vmem:[#allocation8 + $0xc4] sm:$0xf]
          %v1531 = vld [vmem:[#allocation8 + $0xc8] sm:$0xf]
          %v1532 = vld [vmem:[#allocation8 + $0xcc] sm:$0xf]
          %v1533 = vld [vmem:[#allocation8 + $0xd0] sm:$0xf]
          %v1534 = vld [vmem:[#allocation8 + $0xd4] sm:$0xf]
          %v1535 = vld [vmem:[#allocation8 + $0xd8] sm:$0xf]
          %v1536 = vld [vmem:[#allocation8 + $0xdc] sm:$0xf]
          %v1537 = vld [vmem:[#allocation8 + $0xe0] sm:$0xf]
          %v1538 = vld [vmem:[#allocation8 + $0xe4] sm:$0xf]
          %v1539 = vld [vmem:[#allocation8 + $0xe8] sm:$0xf]
          %v1540 = vld [vmem:[#allocation8 + $0xec] sm:$0xf]
          %v1541 = vld [vmem:[#allocation8 + $0xf0] sm:$0xf]
          %v1542 = vld [vmem:[#allocation8 + $0xf4] sm:$0xf]
          %v1543 = vld [vmem:[#allocation8 + $0xf8] sm:$0xf]
          %v1544 = vld [vmem:[#allocation8 + $0xfc] sm:$0xf]
          %v1545 = vld [vmem:[%s4] sm:$0x1]
          %v1547 = vlaneseq
          %v1548 = vshrl.u32 %v1547, 7
          %v1549 = vsub.s32 0, %v1548
          %v1550 = vrot.slane %v1545, %v1549
          %v1616 = vunpack.c.l.b16 %v1481
          %v1617 = vunpack.c.l.b16 %v1482
          %v1618 = vunpack.c.l.b16 %v1483
          %v1619 = vunpack.c.l.b16 %v1484
          %v1620 = vunpack.c.l.b16 %v1485
          %v1621 = vunpack.c.l.b16 %v1486
          %v1622 = vunpack.c.l.b16 %v1487
          %v1623 = vunpack.c.l.b16 %v1488
          %v1624 = vunpack.c.l.b16 %v1489
          %v1625 = vunpack.c.l.b16 %v1490
          %v1626 = vunpack.c.l.b16 %v1491
          %v1627 = vunpack.c.l.b16 %v1492
          %v1628 = vunpack.c.l.b16 %v1493
          %v1629 = vunpack.c.l.b16 %v1494
          %v1630 = vunpack.c.l.b16 %v1495
          %v1631 = vunpack.c.l.b16 %v1496
          %v1632 = vunpack.c.l.b16 %v1497
          %v1633 = vunpack.c.l.b16 %v1498
          %v1634 = vunpack.c.l.b16 %v1499
          %v1635 = vunpack.c.l.b16 %v1500
          %v1636 = vunpack.c.l.b16 %v1501
          %v1637 = vunpack.c.l.b16 %v1502
          %v1638 = vunpack.c.l.b16 %v1503
          %v1639 = vunpack.c.l.b16 %v1504
          %v1640 = vunpack.c.l.b16 %v1505
          %v1641 = vunpack.c.l.b16 %v1506
          %v1642 = vunpack.c.l.b16 %v1507
          %v1643 = vunpack.c.l.b16 %v1508
          %v1644 = vunpack.c.l.b16 %v1509
          %v1645 = vunpack.c.l.b16 %v1510
          %v1646 = vunpack.c.l.b16 %v1511
          %v1647 = vunpack.c.l.b16 %v1512
          %v1648 = vunpack.c.l.b16 %v1513
          %v1649 = vunpack.c.l.b16 %v1514
          %v1650 = vunpack.c.l.b16 %v1515
          %v1651 = vunpack.c.l.b16 %v1516
          %v1652 = vunpack.c.l.b16 %v1517
          %v1653 = vunpack.c.l.b16 %v1518
          %v1654 = vunpack.c.l.b16 %v1519
          %v1655 = vunpack.c.l.b16 %v1520
          %v1656 = vunpack.c.l.b16 %v1521
          %v1657 = vunpack.c.l.b16 %v1522
          %v1658 = vunpack.c.l.b16 %v1523
          %v1659 = vunpack.c.l.b16 %v1524
          %v1660 = vunpack.c.l.b16 %v1525
          %v1661 = vunpack.c.l.b16 %v1526
          %v1662 = vunpack.c.l.b16 %v1527
          %v1663 = vunpack.c.l.b16 %v1528
          %v1664 = vunpack.c.l.b16 %v1529
          %v1665 = vunpack.c.l.b16 %v1530
          %v1666 = vunpack.c.l.b16 %v1531
          %v1667 = vunpack.c.l.b16 %v1532
          %v1668 = vunpack.c.l.b16 %v1533
          %v1669 = vunpack.c.l.b16 %v1534
          %v1670 = vunpack.c.l.b16 %v1535
          %v1671 = vunpack.c.l.b16 %v1536
          %v1672 = vunpack.c.l.b16 %v1537
          %v1673 = vunpack.c.l.b16 %v1538
          %v1674 = vunpack.c.l.b16 %v1539
          %v1675 = vunpack.c.l.b16 %v1540
          %v1676 = vunpack.c.l.b16 %v1541
          %v1677 = vunpack.c.l.b16 %v1542
          %v1678 = vunpack.c.l.b16 %v1543
          %v1679 = vunpack.c.l.b16 %v1544
          %v1680 = vpack.c.b16 %v1617, %v1616
          %v1681 = vpack.c.b16 %v1619, %v1618
          %v1682 = vpack.c.b16 %v1621, %v1620
          %v1683 = vpack.c.b16 %v1623, %v1622
          %v1684 = vpack.c.b16 %v1625, %v1624
          %v1685 = vpack.c.b16 %v1627, %v1626
          %v1686 = vpack.c.b16 %v1629, %v1628
          %v1687 = vpack.c.b16 %v1631, %v1630
          %v1688 = vpack.c.b16 %v1633, %v1632
          %v1689 = vpack.c.b16 %v1635, %v1634
          %v1690 = vpack.c.b16 %v1637, %v1636
          %v1691 = vpack.c.b16 %v1639, %v1638
          %v1692 = vpack.c.b16 %v1641, %v1640
          %v1693 = vpack.c.b16 %v1643, %v1642
          %v1694 = vpack.c.b16 %v1645, %v1644
          %v1695 = vpack.c.b16 %v1647, %v1646
          %v1696 = vpack.c.b16 %v1649, %v1648
          %v1697 = vpack.c.b16 %v1651, %v1650
          %v1698 = vpack.c.b16 %v1653, %v1652
          %v1699 = vpack.c.b16 %v1655, %v1654
          %v1700 = vpack.c.b16 %v1657, %v1656
          %v1701 = vpack.c.b16 %v1659, %v1658
          %v1702 = vpack.c.b16 %v1661, %v1660
          %v1703 = vpack.c.b16 %v1663, %v1662
          %v1704 = vpack.c.b16 %v1665, %v1664
          %v1705 = vpack.c.b16 %v1667, %v1666
          %v1706 = vpack.c.b16 %v1669, %v1668
          %v1707 = vpack.c.b16 %v1671, %v1670
          %v1708 = vpack.c.b16 %v1673, %v1672
          %v1709 = vpack.c.b16 %v1675, %v1674
          %v1710 = vpack.c.b16 %v1677, %v1676
          %v1711 = vpack.c.b16 %v1679, %v1678
          %1744 = vmatprep.subr.bf16.mxu0 0
          %1745 = vmatpush1.bf16.msra.mxu0 %v1680
          %1746 = vmatprep.subr.bf16.mxu0 0
          %1747 = vmatpush1.bf16.msra.mxu0 %v1681
          %1748 = vmatprep.subr.bf16.mxu0 0
          %1749 = vmatpush1.bf16.msra.mxu0 %v1682
          %1750 = vmatprep.subr.bf16.mxu0 0
          %1751 = vmatpush1.bf16.msra.mxu0 %v1683
          %1752 = vmatprep.subr.bf16.mxu0 0
          %1753 = vmatpush1.bf16.msra.mxu0 %v1684
          %1754 = vmatprep.subr.bf16.mxu0 0
          %1755 = vmatpush1.bf16.msra.mxu0 %v1685
          %1756 = vmatprep.subr.bf16.mxu0 0
          %1757 = vmatpush1.bf16.msra.mxu0 %v1686
          %1758 = vmatprep.subr.bf16.mxu0 0
          %1759 = vmatpush1.bf16.msra.mxu0 %v1687
          %1760 = vmatprep.subr.bf16.mxu0 0
          %1761 = vmatpush1.bf16.msra.mxu0 %v1688
          %1762 = vmatprep.subr.bf16.mxu0 0
          %1763 = vmatpush1.bf16.msra.mxu0 %v1689
          %1764 = vmatprep.subr.bf16.mxu0 0
          %1765 = vmatpush1.bf16.msra.mxu0 %v1690
          %1766 = vmatprep.subr.bf16.mxu0 0
          %1767 = vmatpush1.bf16.msra.mxu0 %v1691
          %1768 = vmatprep.subr.bf16.mxu0 0
          %1769 = vmatpush1.bf16.msra.mxu0 %v1692
          %1770 = vmatprep.subr.bf16.mxu0 0
          %1771 = vmatpush1.bf16.msra.mxu0 %v1693
          %1772 = vmatprep.subr.bf16.mxu0 0
          %1773 = vmatpush1.bf16.msra.mxu0 %v1694
          %1774 = vmatprep.subr.bf16.mxu0 0
          %1775 = vmatpush1.bf16.msra.mxu0 %v1695
          %1776 = vmatprep.mubr.bf16.mxu0 %v1450
          %1777 = vmatmul.mubr.bf16.gmra.mrb[0].mxu0 %v1449
          %v1778 = vpop.f32.mrb[0].mxu0
          %v1779 = vadd.f32 %v1550, %v1778
          %v1780 = vpop.f32.mrb[0].mxu0
          %v1781 = vpop.f32.mrb[0].mxu0
          %v1782 = vadd.f32 %v1550, %v1781
          %v1783 = vpop.f32.mrb[0].mxu0
          %1784 = vmatprep.mubr.bf16.mxu0 %v1454
          %1785 = vmatmul.mubr.bf16.gmra.mrb[0].mxu0 %v1453
          %v1786 = vpop.f32.mrb[0].mxu0
          %v1787 = vadd.f32 %v1550, %v1786
          %v1788 = vpop.f32.mrb[0].mxu0
          %v1789 = vpop.f32.mrb[0].mxu0
          %v1790 = vadd.f32 %v1550, %v1789
          %v1791 = vpop.f32.mrb[0].mxu0
          %1792 = vmatprep.mubr.bf16.mxu0 %v1458
          %1793 = vmatmul.mubr.bf16.gmra.mrb[0].mxu0 %v1457
          %v1794 = vpop.f32.mrb[0].mxu0
          %v1795 = vadd.f32 %v1550, %v1794
          %v1796 = vpop.f32.mrb[0].mxu0
          %v1797 = vpop.f32.mrb[0].mxu0
          %v1798 = vadd.f32 %v1550, %v1797
          %v1799 = vpop.f32.mrb[0].mxu0
          %1800 = vmatprep.mubr.bf16.mxu0 %v1462
          %1801 = vmatmul.mubr.bf16.gmra.mrb[0].mxu0 %v1461
          %v1802 = vpop.f32.mrb[0].mxu0
          %v1803 = vadd.f32 %v1550, %v1802
          %v1804 = vpop.f32.mrb[0].mxu0
          %v1805 = vpop.f32.mrb[0].mxu0
          %v1806 = vadd.f32 %v1550, %v1805
          %v1807 = vpop.f32.mrb[0].mxu0
          %1808 = vmatprep.mubr.bf16.mxu0 %v1466
          %1809 = vmatmul.mubr.bf16.gmra.mrb[0].mxu0 %v1465
          %v1810 = vpop.f32.mrb[0].mxu0
          %v1811 = vadd.f32 %v1550, %v1810
          %v1812 = vpop.f32.mrb[0].mxu0
          %v1813 = vpop.f32.mrb[0].mxu0
          %v1814 = vadd.f32 %v1550, %v1813
          %v1815 = vpop.f32.mrb[0].mxu0
          %1816 = vmatprep.mubr.bf16.mxu0 %v1470
          %1817 = vmatmul.mubr.bf16.gmra.mrb[0].mxu0 %v1469
          %v1818 = vpop.f32.mrb[0].mxu0
          %v1819 = vadd.f32 %v1550, %v1818
          %v1820 = vpop.f32.mrb[0].mxu0
          %v1821 = vpop.f32.mrb[0].mxu0
          %v1822 = vadd.f32 %v1550, %v1821
          %v1823 = vpop.f32.mrb[0].mxu0
          %1824 = vmatprep.mubr.bf16.mxu0 %v1474
          %1825 = vmatmul.mubr.bf16.gmra.mrb[0].mxu0 %v1473
          %v1826 = vpop.f32.mrb[0].mxu0
          %v1827 = vadd.f32 %v1550, %v1826
          %v1828 = vpop.f32.mrb[0].mxu0
          %v1829 = vpop.f32.mrb[0].mxu0
          %v1830 = vadd.f32 %v1550, %v1829
          %v1831 = vpop.f32.mrb[0].mxu0
          %1832 = vmatprep.mubr.bf16.mxu0 %v1478
          %1833 = vmatmul.mubr.bf16.gmra.mrb[0].mxu0 %v1477
          %v1834 = vpop.f32.mrb[0].mxu0
          %v1835 = vadd.f32 %v1550, %v1834
          %v1836 = vpop.f32.mrb[0].mxu0
          %v1837 = vpop.f32.mrb[0].mxu0
          %v1838 = vadd.f32 %v1550, %v1837
          %v1839 = vpop.f32.mrb[0].mxu0
          %1840 = vdwg.mxu0
          %1841 = vmatprep.subr.bf16.mxu0 0
          %1842 = vmatpush1.bf16.msra.mxu0 %v1696
          %1843 = vmatprep.subr.bf16.mxu0 0
          %1844 = vmatpush1.bf16.msra.mxu0 %v1697
          %1845 = vmatprep.subr.bf16.mxu0 0
          %1846 = vmatpush1.bf16.msra.mxu0 %v1698
          %1847 = vmatprep.subr.bf16.mxu0 0
          %1848 = vmatpush1.bf16.msra.mxu0 %v1699
          %1849 = vmatprep.subr.bf16.mxu0 0
          %1850 = vmatpush1.bf16.msra.mxu0 %v1700
          %1851 = vmatprep.subr.bf16.mxu0 0
          %1852 = vmatpush1.bf16.msra.mxu0 %v1701
          %1853 = vmatprep.subr.bf16.mxu0 0
          %1854 = vmatpush1.bf16.msra.mxu0 %v1702
          %1855 = vmatprep.subr.bf16.mxu0 0
          %1856 = vmatpush1.bf16.msra.mxu0 %v1703
          %1857 = vmatprep.subr.bf16.mxu0 0
          %1858 = vmatpush1.bf16.msra.mxu0 %v1704
          %1859 = vmatprep.subr.bf16.mxu0 0
          %1860 = vmatpush1.bf16.msra.mxu0 %v1705
          %1861 = vmatprep.subr.bf16.mxu0 0
          %1862 = vmatpush1.bf16.msra.mxu0 %v1706
          %1863 = vmatprep.subr.bf16.mxu0 0
          %1864 = vmatpush1.bf16.msra.mxu0 %v1707
          %1865 = vmatprep.subr.bf16.mxu0 0
          %1866 = vmatpush1.bf16.msra.mxu0 %v1708
          %1867 = vmatprep.subr.bf16.mxu0 0
          %1868 = vmatpush1.bf16.msra.mxu0 %v1709
          %1869 = vmatprep.subr.bf16.mxu0 0
          %1870 = vmatpush1.bf16.msra.mxu0 %v1710
          %1871 = vmatprep.subr.bf16.mxu0 0
          %1872 = vmatpush1.bf16.msra.mxu0 %v1711
          %1873 = vmatprep.mubr.bf16.mxu0 %v1452
          %1874 = vmatmul.mubr.bf16.gmra.mrb[0].mxu0 %v1451
          %v1875 = vpop.f32.mrb[0].mxu0
          %v1876 = vadd.f32 %v1779, %v1875
          %v1877 = vpop.f32.mrb[0].mxu0
          %v1878 = vpop.f32.mrb[0].mxu0
          %v1879 = vadd.f32 %v1782, %v1878
          %v1880 = vpop.f32.mrb[0].mxu0
          %1881 = vmatprep.mubr.bf16.mxu0 %v1456
          %1882 = vmatmul.mubr.bf16.gmra.mrb[0].mxu0 %v1455
          %v1883 = vpop.f32.mrb[0].mxu0
          %v1884 = vadd.f32 %v1787, %v1883
          %v1885 = vpop.f32.mrb[0].mxu0
          %v1886 = vpop.f32.mrb[0].mxu0
          %v1887 = vadd.f32 %v1790, %v1886
          %v1888 = vpop.f32.mrb[0].mxu0
          %1889 = vmatprep.mubr.bf16.mxu0 %v1460
          %1890 = vmatmul.mubr.bf16.gmra.mrb[0].mxu0 %v1459
          %v1891 = vpop.f32.mrb[0].mxu0
          %v1892 = vadd.f32 %v1795, %v1891
          %v1893 = vpop.f32.mrb[0].mxu0
          %v1894 = vpop.f32.mrb[0].mxu0
          %v1895 = vadd.f32 %v1798, %v1894
          %v1896 = vpop.f32.mrb[0].mxu0
          %1897 = vmatprep.mubr.bf16.mxu0 %v1464
          %1898 = vmatmul.mubr.bf16.gmra.mrb[0].mxu0 %v1463
          %v1899 = vpop.f32.mrb[0].mxu0
          %v1900 = vadd.f32 %v1803, %v1899
          %v1901 = vpop.f32.mrb[0].mxu0
          %v1902 = vpop.f32.mrb[0].mxu0
          %v1903 = vadd.f32 %v1806, %v1902
          %v1904 = vpop.f32.mrb[0].mxu0
          %1905 = vmatprep.mubr.bf16.mxu0 %v1468
          %1906 = vmatmul.mubr.bf16.gmra.mrb[0].mxu0 %v1467
          %v1907 = vpop.f32.mrb[0].mxu0
          %v1908 = vadd.f32 %v1811, %v1907
          %v1909 = vpop.f32.mrb[0].mxu0
          %v1910 = vpop.f32.mrb[0].mxu0
          %v1911 = vadd.f32 %v1814, %v1910
          %v1912 = vpop.f32.mrb[0].mxu0
          %1913 = vmatprep.mubr.bf16.mxu0 %v1472
          %1914 = vmatmul.mubr.bf16.gmra.mrb[0].mxu0 %v1471
          %v1915 = vpop.f32.mrb[0].mxu0
          %v1916 = vadd.f32 %v1819, %v1915
          %v1917 = vpop.f32.mrb[0].mxu0
          %v1918 = vpop.f32.mrb[0].mxu0
          %v1919 = vadd.f32 %v1822, %v1918
          %v1920 = vpop.f32.mrb[0].mxu0
          %1921 = vmatprep.mubr.bf16.mxu0 %v1476
          %1922 = vmatmul.mubr.bf16.gmra.mrb[0].mxu0 %v1475
          %v1923 = vpop.f32.mrb[0].mxu0
          %v1924 = vadd.f32 %v1827, %v1923
          %v1925 = vpop.f32.mrb[0].mxu0
          %v1926 = vpop.f32.mrb[0].mxu0
          %v1927 = vadd.f32 %v1830, %v1926
          %v1928 = vpop.f32.mrb[0].mxu0
          %1929 = vmatprep.mubr.bf16.mxu0 %v1480
          %1930 = vmatmul.mubr.bf16.gmra.mrb[0].mxu0 %v1479
          %v1931 = vpop.f32.mrb[0].mxu0
          %v1932 = vadd.f32 %v1835, %v1931
          %v1933 = vpop.f32.mrb[0].mxu0
          %v1934 = vpop.f32.mrb[0].mxu0
          %v1935 = vadd.f32 %v1838, %v1934
          %v1936 = vpop.f32.mrb[0].mxu0
          %1937 = vdwg.mxu0
          %1938 = vmax.xlane.f32.xlu0 %v1876
          %v1939 = vpop.xlane.xlu0 %1938
          %1940 = vmax.xlane.f32.xlu0 %v1879
          %v1941 = vpop.xlane.xlu0 %1940
          %1942 = vmax.xlane.f32.xlu0 %v1884
          %v1943 = vpop.xlane.xlu0 %1942
          %1944 = vmax.xlane.f32.xlu0 %v1887
          %v1945 = vpop.xlane.xlu0 %1944
          %1946 = vmax.xlane.f32.xlu0 %v1892
          %v1947 = vpop.xlane.xlu0 %1946
          %1948 = vmax.xlane.f32.xlu0 %v1895
          %v1949 = vpop.xlane.xlu0 %1948
          %1950 = vmax.xlane.f32.xlu0 %v1900
          %v1951 = vpop.xlane.xlu0 %1950
          %1952 = vmax.xlane.f32.xlu0 %v1903
          %v1953 = vpop.xlane.xlu0 %1952
          %1954 = vmax.xlane.f32.xlu0 %v1908
          %v1955 = vpop.xlane.xlu0 %1954
          %1956 = vmax.xlane.f32.xlu0 %v1911
          %v1957 = vpop.xlane.xlu0 %1956
          %1958 = vmax.xlane.f32.xlu0 %v1916
          %v1959 = vpop.xlane.xlu0 %1958
          %1960 = vmax.xlane.f32.xlu0 %v1919
          %v1961 = vpop.xlane.xlu0 %1960
          %1962 = vmax.xlane.f32.xlu0 %v1924
          %v1963 = vpop.xlane.xlu0 %1962
          %1964 = vmax.xlane.f32.xlu0 %v1927
          %v1965 = vpop.xlane.xlu0 %1964
          %1966 = vmax.xlane.f32.xlu0 %v1932
          %v1967 = vpop.xlane.xlu0 %1966
          %1968 = vmax.xlane.f32.xlu0 %v1935
          %v1969 = vpop.xlane.xlu0 %1968
          %v1970 = vsub.f32 %v1876, %v1939
          %v1971 = vsub.f32 %v1879, %v1941
          %v1972 = vsub.f32 %v1884, %v1943
          %v1973 = vsub.f32 %v1887, %v1945
          %v1974 = vsub.f32 %v1892, %v1947
          %v1975 = vsub.f32 %v1895, %v1949
          %v1976 = vsub.f32 %v1900, %v1951
          %v1977 = vsub.f32 %v1903, %v1953
          %v1978 = vsub.f32 %v1908, %v1955
          %v1979 = vsub.f32 %v1911, %v1957
          %v1980 = vsub.f32 %v1916, %v1959
          %v1981 = vsub.f32 %v1919, %v1961
          %v1982 = vsub.f32 %v1924, %v1963
          %v1983 = vsub.f32 %v1927, %v1965
          %v1984 = vsub.f32 %v1932, %v1967
          %v1985 = vsub.f32 %v1935, %v1969
          %v1986 = vmul.f32 %v1970, 1.442695
          %v1987 = vpow.pop %v1986
          %v1988 = vmul.f32 %v1971, 1.442695
          %v1989 = vpow.pop %v1988
          %v1990 = vmul.f32 %v1972, 1.442695
          %v1991 = vpow.pop %v1990
          %v1992 = vmul.f32 %v1973, 1.442695
          %v1993 = vpow.pop %v1992
          %v1994 = vmul.f32 %v1974, 1.442695
          %v1995 = vpow.pop %v1994
          %v1996 = vmul.f32 %v1975, 1.442695
          %v1997 = vpow.pop %v1996
          %v1998 = vmul.f32 %v1976, 1.442695
          %v1999 = vpow.pop %v1998
          %v2000 = vmul.f32 %v1977, 1.442695
          %v2001 = vpow.pop %v2000
          %v2002 = vmul.f32 %v1978, 1.442695
          %v2003 = vpow.pop %v2002
          %v2004 = vmul.f32 %v1979, 1.442695
          %v2005 = vpow.pop %v2004
          %v2006 = vmul.f32 %v1980, 1.442695
          %v2007 = vpow.pop %v2006
          %v2008 = vmul.f32 %v1981, 1.442695
          %v2009 = vpow.pop %v2008
          %v2010 = vmul.f32 %v1982, 1.442695
          %v2011 = vpow.pop %v2010
          %v2012 = vmul.f32 %v1983, 1.442695
          %v2013 = vpow.pop %v2012
          %v2014 = vmul.f32 %v1984, 1.442695
          %v2015 = vpow.pop %v2014
          %v2016 = vmul.f32 %v1985, 1.442695
          %v2017 = vpow.pop %v2016
          %2018 = vadd.xlane.f32.xlu0 %v1987
          %v2019 = vpop.xlane.xlu0 %2018
          %2020 = vadd.xlane.f32.xlu0 %v1989
          %v2021 = vpop.xlane.xlu0 %2020
          %2022 = vadd.xlane.f32.xlu0 %v1991
          %v2023 = vpop.xlane.xlu0 %2022
          %2024 = vadd.xlane.f32.xlu0 %v1993
          %v2025 = vpop.xlane.xlu0 %2024
          %2026 = vadd.xlane.f32.xlu0 %v1995
          %v2027 = vpop.xlane.xlu0 %2026
          %2028 = vadd.xlane.f32.xlu0 %v1997
          %v2029 = vpop.xlane.xlu0 %2028
          %2030 = vadd.xlane.f32.xlu0 %v1999
          %v2031 = vpop.xlane.xlu0 %2030
          %2032 = vadd.xlane.f32.xlu0 %v2001
          %v2033 = vpop.xlane.xlu0 %2032
          %2034 = vadd.xlane.f32.xlu0 %v2003
          %v2035 = vpop.xlane.xlu0 %2034
          %2036 = vadd.xlane.f32.xlu0 %v2005
          %v2037 = vpop.xlane.xlu0 %2036
          %2038 = vadd.xlane.f32.xlu0 %v2007
          %v2039 = vpop.xlane.xlu0 %2038
          %2040 = vadd.xlane.f32.xlu0 %v2009
          %v2041 = vpop.xlane.xlu0 %2040
          %2042 = vadd.xlane.f32.xlu0 %v2011
          %v2043 = vpop.xlane.xlu0 %2042
          %2044 = vadd.xlane.f32.xlu0 %v2013
          %v2045 = vpop.xlane.xlu0 %2044
          %2046 = vadd.xlane.f32.xlu0 %v2015
          %v2047 = vpop.xlane.xlu0 %2046
          %2048 = vadd.xlane.f32.xlu0 %v2017
          %v2049 = vpop.xlane.xlu0 %2048
          %v2050 = vlog2.pop %v2019
          %v2051 = vmul.f32 %v2050, 0.6931472
          %v2052 = vlog2.pop %v2021
          %v2053 = vmul.f32 %v2052, 0.6931472
          %v2054 = vlog2.pop %v2023
          %v2055 = vmul.f32 %v2054, 0.6931472
          %v2056 = vlog2.pop %v2025
          %v2057 = vmul.f32 %v2056, 0.6931472
          %v2058 = vlog2.pop %v2027
          %v2059 = vmul.f32 %v2058, 0.6931472
          %v2060 = vlog2.pop %v2029
          %v2061 = vmul.f32 %v2060, 0.6931472
          %v2062 = vlog2.pop %v2031
          %v2063 = vmul.f32 %v2062, 0.6931472
          %v2064 = vlog2.pop %v2033
          %v2065 = vmul.f32 %v2064, 0.6931472
          %v2066 = vlog2.pop %v2035
          %v2067 = vmul.f32 %v2066, 0.6931472
          %v2068 = vlog2.pop %v2037
          %v2069 = vmul.f32 %v2068, 0.6931472
          %v2070 = vlog2.pop %v2039
          %v2071 = vmul.f32 %v2070, 0.6931472
          %v2072 = vlog2.pop %v2041
          %v2073 = vmul.f32 %v2072, 0.6931472
          %v2074 = vlog2.pop %v2043
          %v2075 = vmul.f32 %v2074, 0.6931472
          %v2076 = vlog2.pop %v2045
          %v2077 = vmul.f32 %v2076, 0.6931472
          %v2078 = vlog2.pop %v2047
          %v2079 = vmul.f32 %v2078, 0.6931472
          %v2080 = vlog2.pop %v2049
          %v2081 = vmul.f32 %v2080, 0.6931472
          %v2082 = vsub.f32 %v1970, %v2051
          %v2083 = vsub.f32 %v1971, %v2053
          %v2084 = vsub.f32 %v1972, %v2055
          %v2085 = vsub.f32 %v1973, %v2057
          %v2086 = vsub.f32 %v1974, %v2059
          %v2087 = vsub.f32 %v1975, %v2061
          %v2088 = vsub.f32 %v1976, %v2063
          %v2089 = vsub.f32 %v1977, %v2065
          %v2090 = vsub.f32 %v1978, %v2067
          %v2091 = vsub.f32 %v1979, %v2069
          %v2092 = vsub.f32 %v1980, %v2071
          %v2093 = vsub.f32 %v1981, %v2073
          %v2094 = vsub.f32 %v1982, %v2075
          %v2095 = vsub.f32 %v1983, %v2077
          %v2096 = vsub.f32 %v1984, %v2079
          %v2097 = vsub.f32 %v1985, %v2081
          %2098 = vst [vmem:[#allocation9] sm:$0xff] %v2082
          %2099 = vst [vmem:[#allocation9 + $0x8] sm:$0xff] %v2083
          %2100 = vst [vmem:[#allocation9 + $0x10] sm:$0xff] %v2084
          %2101 = vst [vmem:[#allocation9 + $0x18] sm:$0xff] %v2085
          %2102 = vst [vmem:[#allocation9 + $0x20] sm:$0xff] %v2086
          %2103 = vst [vmem:[#allocation9 + $0x28] sm:$0xff] %v2087
          %2104 = vst [vmem:[#allocation9 + $0x30] sm:$0xff] %v2088
          %2105 = vst [vmem:[#allocation9 + $0x38] sm:$0xff] %v2089
          %2106 = vst [vmem:[#allocation9 + $0x40] sm:$0xff] %v2090
          %2107 = vst [vmem:[#allocation9 + $0x48] sm:$0xff] %v2091
          %2108 = vst [vmem:[#allocation9 + $0x50] sm:$0xff] %v2092
          %2109 = vst [vmem:[#allocation9 + $0x58] sm:$0xff] %v2093
          %2110 = vst [vmem:[#allocation9 + $0x60] sm:$0xff] %v2094
          %2111 = vst [vmem:[#allocation9 + $0x68] sm:$0xff] %v2095
          %2112 = vst [vmem:[#allocation9 + $0x70] sm:$0xff] %v2096
          %2113 = vst [vmem:[#allocation9 + $0x78] sm:$0xff] %v2097
        $region60: #{tpu_custom_call.1} parent=39 // pred_fallthru
          _
        // Predicated region
        $region61: #{tpu_custom_call.1} parent=39 // pred_check
          %p2114 = pneg %p170
        $region62: #{tpu_custom_call.1} parent=39 // pred_check_branch
          %2116 = sbr.rel (%p2114) target = $region64
        $region63: #{tpu_custom_call.1} parent=39 // pred_region
          %s2117 = smul.u32 16, %s27
          %s2119 = ssub.s32 2048, 2048
          %2120 = vsyncadd [#allocation5], %s2119
          %s2121 = smul.addr %s2117, 128
          %s2122 = scalar_lea.hbm %s5, %s2121
          %s2123 = sshll.u32 [#allocation9], 4
          %s2124 = int_to_ptr.vmem [resolvable:$true] %s2123
          %2129 = dma.vmem_to_hbm [thread:$0]  %s2124, 2048, %s2122, [#allocation5], 128, 128, 8
        $region64: #{tpu_custom_call.1} parent=39 // pred_fallthru
          _
        // Predicated region
        $region65: #{tpu_custom_call.1} parent=39 // pred_check
          %p2130 = pneg %p170
        $region66: #{tpu_custom_call.1} parent=39 // pred_check_branch
          %2132 = sbr.rel (%p2130) target = $region68
        $region67: #{tpu_custom_call.1} parent=39 // pred_region
          %2133 = dma.done [#allocation5], 2048
        $region68: #{tpu_custom_call.1} parent=39 // pred_fallthru
          _
      $region40: #{tpu_custom_call.1} parent=5 // pred_fallthru
        _
      %p2134 = scmp.le.s32.totalorder 2, %s18
      // Predicated region
      $region69: #{tpu_custom_call.1} parent=5 // pred_check
        %p2135 = pneg %p2134
      $region70: #{tpu_custom_call.1} parent=5 // pred_check_branch
        %2137 = sbr.rel (%p2135) target = $region72
      $region71: #{tpu_custom_call.1} parent=5 // pred_region
        %s2138 = ssub.s32 %s18, 2
      $region72: #{tpu_custom_call.1} parent=5 // pred_fallthru
        _
    $region6: #{tpu_custom_call.1} parent=1 // loop_footer
      %s22 = sadd.s32 1, %s18
    $region7: #{tpu_custom_call.1} parent=1 // loop_footer_branch
      %17 = sbr.rel target = $region3
    $region8: #{tpu_custom_call.1} parent=1 // loop_exit
      _
    %2139 = vsyncpa [#allocation4], 1
    %s2140 = scalar_lea.sflag [#allocation4], 1
    %2141 = vsyncpa %s2140, 1
    %2142 = vsyncpa [#allocation7], 1
    %s2143 = scalar_lea.sflag [#allocation7], 1
    %2144 = vsyncpa %s2143, 1
    %2145 = vsyncpa [#allocation5], 1
    %s2146 = scalar_lea.sflag [#allocation5], 1
    %2147 = vsyncpa %s2146, 1

</llo_original>
